<compile_context>
chip_gen: v7x
topology: tpu7x:2x2x1
jax: 0.10.0
libtpu: 0.0.40
codegen_flags: <defaults>
</compile_context>

<pallas_src>
import functools

import jax
import jax.numpy as jnp
from jax.experimental import pallas as pl
from jax.experimental.pallas import tpu as pltpu

NEG_FILL = -100000000000.0  # plain Python float: safe to close over in the kernel

_LANE = 128   # TPU lane width


def _round_up(x, m):
    return ((x + m - 1) // m) * m


def _pick_tb(batch):
    """Batch tile: exact (sublane-rounded) fit for small AGEM batches, MXU-row
    sized for large batches (256 on v6e/v7x, 128 otherwise)."""
    if batch <= 128:
        return _round_up(max(batch, 1), 16)   # one grid step, no 128-row waste
    rows = 128
    try:
        kind = jax.devices()[0].device_kind.lower()
        if any(g in kind for g in ("v6", "v7", "trillium")):
            rows = 256                         # 2x256x256 MXU generations
    except Exception:
        pass
    return rows


def _net_forward_kernel(t_ref, x_ref, w1_ref, b1_ref, w2_ref, b2_ref,
                        w3_ref, b3_ref, out_ref, *, nc_per_task):
    """Fused MLP forward + task-logit masking for one batch tile.

    t_ref  : SMEM (1,) int32        -- task id (scalar prefetch)
    x_ref  : VMEM (TB, Dp)  bf16    -- flattened NCHW input tile (lane-padded)
    w1/b1  : (Dp, NHp) bf16 / (1, NHp) f32
    w2/b2  : (NHp, NHp) bf16 / (1, NHp) f32
    w3/b3  : (NHp, NOp) bf16 / (1, NOp) f32
    out_ref: (TB, NOp) out_dtype
    """
    x = x_ref[...]

    # hidden layer 1: MXU matmul (bf16 in, f32 accumulate) + VPU relu
    h = jnp.dot(x, w1_ref[...], preferred_element_type=jnp.float32) + b1_ref[...]
    h = jnp.maximum(h, 0.0).astype(x.dtype)

    # hidden layer 2
    h = jnp.dot(h, w2_ref[...], preferred_element_type=jnp.float32) + b2_ref[...]
    h = jnp.maximum(h, 0.0).astype(x.dtype)

    # output layer (lane-dense padded logits)
    out = jnp.dot(h, w3_ref[...], preferred_element_type=jnp.float32) + b3_ref[...]

    # task masking: single (1, NOp) column-index row, broadcast over the tile.
    # Padded logit columns (col >= n_outputs) fall outside every task window
    # and get NEG_FILL too; the wrapper slices them away.
    t = t_ref[0]
    offset1 = t * nc_per_task
    offset2 = offset1 + nc_per_task
    col = jax.lax.broadcasted_iota(jnp.int32, (1, out.shape[1]), 1)
    keep = (col >= offset1) & (col < offset2)
    out_ref[...] = jnp.where(keep, out, NEG_FILL).astype(out_ref.dtype)


def prepare_params(params):
    """Pad + cast the MLP weights ONCE (lane-dense bf16, f32 biases).

    Call this once per parameter update and reuse the result across forward
    calls -- this removes the per-call pad/cast HBM traffic that dominated
    the memory-bound forward.
    """
    w1, b1, w2, b2, w3, b3 = params
    D, NH = w1.shape
    NO = w3.shape[1]
    Dp = _round_up(D, _LANE)
    NHp = _round_up(NH, _LANE)
    NOp = _round_up(NO, _LANE)

    w1p = jnp.pad(w1, ((0, Dp - D), (0, NHp - NH))).astype(jnp.bfloat16)
    b1p = jnp.pad(b1, ((0, 0), (0, NHp - NH))).astype(jnp.float32)
    w2p = jnp.pad(w2, ((0, NHp - NH), (0, NHp - NH))).astype(jnp.bfloat16)
    b2p = jnp.pad(b2, ((0, 0), (0, NHp - NH))).astype(jnp.float32)
    w3p = jnp.pad(w3, ((0, NHp - NH), (0, NOp - NO))).astype(jnp.bfloat16)
    b3p = jnp.pad(b3, ((0, 0), (0, NOp - NO))).astype(jnp.float32)

    meta = dict(D=D, Dp=Dp, NH=NH, NHp=NHp, NO=NO, NOp=NOp)
    return (w1p, b1p, w2p, b2p, w3p, b3p), meta


def net_forward(x_nchw, t, prepared, meta, *, nc_per_task, n_outputs,
                tb=None, out_dtype=jnp.float32):
    """Flatten NCHW input, pad to TPU tiles, run the fused Pallas kernel."""
    w1p, b1p, w2p, b2p, w3p, b3p = prepared
    D, Dp, NHp, NOp = meta["D"], meta["Dp"], meta["NHp"], meta["NOp"]

    B = x_nchw.shape[0]
    TB = int(tb) if tb is not None else _pick_tb(B)
    Bp = _round_up(max(B, 1), TB)

    # --- wrapper-side padding / casting of the *streaming* operand only ---
    x_flat = x_nchw.reshape(B, -1).astype(jnp.float32)        # row-major == .view
    x_flat = jnp.pad(x_flat, ((0, Bp - B), (0, Dp - D))).astype(jnp.bfloat16)

    t_arr = jnp.asarray([t], dtype=jnp.int32)

    kernel = functools.partial(_net_forward_kernel, nc_per_task=nc_per_task)

    out_itemsize = jnp.dtype(out_dtype).itemsize

    # VMEM budget: weights (single-buffered when Buffered(1) is honored, so
    # allow 2x as a safety margin) + double-buffered x/out tiles + headroom.
    weight_vmem = ((Dp * NHp + NHp * NHp + NHp * NOp) * 2
                   + (2 * NHp + NOp) * 4)
    stream_vmem = 2 * TB * Dp * 2 + 2 * TB * NOp * out_itemsize
    vmem_limit = 2 * weight_vmem + stream_vmem + (16 << 20)
    vmem_limit = int(min(max(vmem_limit, 16 << 20), 64 << 20))  # v7x physical cap

    flops = 2 * Bp * (Dp * NHp + NHp * NHp + NHp * NOp)
    bytes_accessed = (
        Bp * Dp * 2                                            # x (bf16)
        + (Dp * NHp + NHp * NHp + NHp * NOp) * 2               # weights (bf16)
        + (2 * NHp + NOp) * 4                                  # biases (f32)
        + Bp * NOp * out_itemsize                              # out
    )

    def _resident_spec(shape, mode):
        # Weights/biases stay resident across the batch grid (index_map -> (0,0)).
        if mode is None:
            return pl.BlockSpec(shape, lambda i, t: (0, 0))
        return pl.BlockSpec(shape, lambda i, t: (0, 0), pipeline_mode=mode)

    def _run(resident_mode):
        grid_spec = pltpu.PrefetchScalarGridSpec(
            num_scalar_prefetch=1,            # t_arr -> SMEM, passed first to kernel
            grid=(Bp // TB,),
            in_specs=[
                pl.BlockSpec((TB, Dp), lambda i, t: (i, 0)),   # x tile (streams)
                _resident_spec((Dp, NHp), resident_mode),      # w1
                _resident_spec((1, NHp), resident_mode),       # b1
                _resident_spec((NHp, NHp), resident_mode),     # w2
                _resident_spec((1, NHp), resident_mode),       # b2
                _resident_spec((NHp, NOp), resident_mode),     # w3
                _resident_spec((1, NOp), resident_mode),       # b3
            ],
            out_specs=pl.BlockSpec((TB, NOp), lambda i, t: (i, 0)),
        )
        return pl.pallas_call(
            kernel,
            out_shape=jax.ShapeDtypeStruct((Bp, NOp), out_dtype),
            grid_spec=grid_spec,
            compiler_params=pltpu.CompilerParams(
                # independent batch tiles -> shard across TCs on v7x
                dimension_semantics=("parallel",),
                vmem_limit_bytes=vmem_limit,
            ),
            cost_estimate=pl.CostEstimate(
                flops=flops, transcendentals=0, bytes_accessed=bytes_accessed),
        )(t_arr, x_flat, w1p, b1p, w2p, b2p, w3p, b3p)

    # Resident weights want single buffering (constant index_map); fall back to
    # default buffering if this runtime rejects the pipeline_mode request.
    try:
        out_padded = jax.block_until_ready(_run(pl.Buffered(1)))
    except Exception:
        out_padded = _run(None)

    # strip batch / lane padding
    return out_padded[:B, :n_outputs]


def init_params(key, d_in, n_hiddens, n_outputs):
    """Deterministic synthetic parameter init (torch.nn.Linear-style uniform)."""
    ks = jax.random.split(key, 6)

    def lin(kw, kb, fan_in, fan_out):
        bound = 1.0 / jnp.sqrt(jnp.float32(fan_in))
        w = jax.random.uniform(kw, (fan_in, fan_out), jnp.float32, -bound, bound)
        b = jax.random.uniform(kb, (1, fan_out), jnp.float32, -bound, bound)
        return w, b

    w1, b1 = lin(ks[0], ks[1], d_in, n_hiddens)
    w2, b2 = lin(ks[2], ks[3], n_hiddens, n_hiddens)
    w3, b3 = lin(ks[4], ks[5], n_hiddens, n_outputs)
    return (w1, b1, w2, b2, w3, b3)


def reference_forward(x_nchw, t, params, *, nc_per_task, n_outputs):
    """Pure-JAX reference mirroring the kernel's bf16-in / f32-accumulate math."""
    w1, b1, w2, b2, w3, b3 = params

    def mm(a, w):
        return jnp.dot(a.astype(jnp.bfloat16), w.astype(jnp.bfloat16),
                       preferred_element_type=jnp.float32)

    x = x_nchw.reshape(x_nchw.shape[0], -1)
    h = jnp.maximum(mm(x, w1) + b1, 0.0)
    h = jnp.maximum(mm(h, w2) + b2, 0.0)
    out = mm(h, w3) + b3
    o1, o2 = t * nc_per_task, (t + 1) * nc_per_task
    col = jnp.arange(n_outputs)[None, :]
    return jnp.where((col >= o1) & (col < o2), out, NEG_FILL)


if __name__ == "__main__":
    # Small shapes consistent with the module:
    #   images (B, 3, n_inputs, n_inputs); n_outputs classes over n_tasks.
    B = 2
    N_INPUTS = 16            # spatial size -> memory shape (3, 16, 16)
    N_HIDDENS = 32           # args.n_hiddens
    N_OUTPUTS = 8            # total classes
    N_TASKS = 2
    NC_PER_TASK = N_OUTPUTS // N_TASKS
    TASK = 1

    key = jax.random.PRNGKey(0)
    kx, kp = jax.random.split(key)
    x = jax.random.normal(kx, (B, 3, N_INPUTS, N_INPUTS), dtype=jnp.float32)
    params = init_params(kp, 3 * N_INPUTS * N_INPUTS, N_HIDDENS, N_OUTPUTS)

    # Pad/cast the weights once; reuse across forward calls (and across
    # training steps until the optimizer updates the parameters).
    prepared, meta = prepare_params(params)

    out = net_forward(x, TASK, prepared, meta,
                      nc_per_task=NC_PER_TASK, n_outputs=N_OUTPUTS)
    out = jax.block_until_ready(out)

    ref = reference_forward(x, TASK, params, nc_per_task=NC_PER_TASK,
                            n_outputs=N_OUTPUTS)
    assert out.shape == (B, N_OUTPUTS)
    # bf16 inputs with f32 accumulation: allow bf16-level tolerance.
    assert jnp.allclose(out, ref, atol=5e-2, rtol=5e-2), "mismatch vs JAX reference"

    # TODO(synk): observe()/AGEM training path (CE loss, backward, gradient
    # projection, SGD step, episodic-memory CBSR buffer) is host-side training
    # logic, not part of the forward pass kernel.

    print("KERNEL_OK")
</pallas_src>

<mosaic_0001>
module attributes {stable_mosaic.version = 11 : i64} {
  func.func @_net_forward_kernel(%arg0: i32, %arg1: memref<1xi32, #tpu.memory_space<smem>>, %arg2: memref<16x768xbf16, #tpu.memory_space<vmem>>, %arg3: memref<768x128xbf16, #tpu.memory_space<vmem>>, %arg4: memref<1x128xf32, #tpu.memory_space<vmem>>, %arg5: memref<128x128xbf16, #tpu.memory_space<vmem>>, %arg6: memref<1x128xf32, #tpu.memory_space<vmem>>, %arg7: memref<128x128xbf16, #tpu.memory_space<vmem>>, %arg8: memref<1x128xf32, #tpu.memory_space<vmem>>, %arg9: memref<16x128xf32, #tpu.memory_space<vmem>>) attributes {dimension_semantics = [#tpu.dimension_semantics<parallel>], iteration_bounds = array<i64: 1>, scalar_prefetch = 1 : i64, scratch_operands = 0 : i64, tpu.core_type = #tpu.core_type<tc>, window_params = [{transform_indices = @transform_0, window_bounds = array<i64: 16, 768>}, {pipeline_mode = #tpu.pipeline_mode<synchronous>, transform_indices = @transform_1, window_bounds = array<i64: 768, 128>}, {pipeline_mode = #tpu.pipeline_mode<synchronous>, transform_indices = @transform_2, window_bounds = array<i64: 1, 128>}, {pipeline_mode = #tpu.pipeline_mode<synchronous>, transform_indices = @transform_3, window_bounds = array<i64: 128, 128>}, {pipeline_mode = #tpu.pipeline_mode<synchronous>, transform_indices = @transform_4, window_bounds = array<i64: 1, 128>}, {pipeline_mode = #tpu.pipeline_mode<synchronous>, transform_indices = @transform_5, window_bounds = array<i64: 128, 128>}, {pipeline_mode = #tpu.pipeline_mode<synchronous>, transform_indices = @transform_6, window_bounds = array<i64: 1, 128>}, {transform_indices = @transform_7, window_bounds = array<i64: 16, 128>}]} {
    %c0 = arith.constant 0 : index
    %c0_0 = arith.constant 0 : index
    %0 = vector.load %arg2[%c0, %c0_0] : memref<16x768xbf16, #tpu.memory_space<vmem>>, vector<16x768xbf16>
    %c0_1 = arith.constant 0 : index
    %c0_2 = arith.constant 0 : index
    %1 = vector.load %arg3[%c0_1, %c0_2] : memref<768x128xbf16, #tpu.memory_space<vmem>>, vector<768x128xbf16>
    %cst = arith.constant dense<0.000000e+00> : vector<16x128xf32>
    %2 = tpu.matmul %0, %1, %cst {dimension_numbers = #tpu.dot_dimension_numbers<[1], [0], [0], [1], [0, 0, 1, 1], [], []>} : vector<16x768xbf16>, vector<768x128xbf16>, vector<16x128xf32> -> vector<16x128xf32>
    %c0_3 = arith.constant 0 : index
    %c0_4 = arith.constant 0 : index
    %3 = vector.load %arg4[%c0_3, %c0_4] : memref<1x128xf32, #tpu.memory_space<vmem>>, vector<1x128xf32>
    %4 = vector.broadcast %3 : vector<1x128xf32> to vector<16x128xf32>
    %5 = arith.addf %2, %4 : vector<16x128xf32>
    %cst_5 = arith.constant 0.000000e+00 : f32
    %6 = vector.broadcast %cst_5 : f32 to vector<16x128xf32>
    %7 = arith.maximumf %5, %6 : vector<16x128xf32>
    %8 = arith.truncf %7 : vector<16x128xf32> to vector<16x128xbf16>
    %c0_6 = arith.constant 0 : index
    %c0_7 = arith.constant 0 : index
    %9 = vector.load %arg5[%c0_6, %c0_7] : memref<128x128xbf16, #tpu.memory_space<vmem>>, vector<128x128xbf16>
    %cst_8 = arith.constant dense<0.000000e+00> : vector<16x128xf32>
    %10 = tpu.matmul %8, %9, %cst_8 {dimension_numbers = #tpu.dot_dimension_numbers<[1], [0], [0], [1], [0, 0, 1, 1], [], []>} : vector<16x128xbf16>, vector<128x128xbf16>, vector<16x128xf32> -> vector<16x128xf32>
    %c0_9 = arith.constant 0 : index
    %c0_10 = arith.constant 0 : index
    %11 = vector.load %arg6[%c0_9, %c0_10] : memref<1x128xf32, #tpu.memory_space<vmem>>, vector<1x128xf32>
    %12 = vector.broadcast %11 : vector<1x128xf32> to vector<16x128xf32>
    %13 = arith.addf %10, %12 : vector<16x128xf32>
    %cst_11 = arith.constant 0.000000e+00 : f32
    %14 = vector.broadcast %cst_11 : f32 to vector<16x128xf32>
    %15 = arith.maximumf %13, %14 : vector<16x128xf32>
    %16 = arith.truncf %15 : vector<16x128xf32> to vector<16x128xbf16>
    %c0_12 = arith.constant 0 : index
    %c0_13 = arith.constant 0 : index
    %17 = vector.load %arg7[%c0_12, %c0_13] : memref<128x128xbf16, #tpu.memory_space<vmem>>, vector<128x128xbf16>
    %cst_14 = arith.constant dense<0.000000e+00> : vector<16x128xf32>
    %18 = tpu.matmul %16, %17, %cst_14 {dimension_numbers = #tpu.dot_dimension_numbers<[1], [0], [0], [1], [0, 0, 1, 1], [], []>} : vector<16x128xbf16>, vector<128x128xbf16>, vector<16x128xf32> -> vector<16x128xf32>
    %c0_15 = arith.constant 0 : index
    %c0_16 = arith.constant 0 : index
    %19 = vector.load %arg8[%c0_15, %c0_16] : memref<1x128xf32, #tpu.memory_space<vmem>>, vector<1x128xf32>
    %20 = vector.broadcast %19 : vector<1x128xf32> to vector<16x128xf32>
    %21 = arith.addf %18, %20 : vector<16x128xf32>
    %c0_17 = arith.constant 0 : index
    %22 = memref.load %arg1[%c0_17] : memref<1xi32, #tpu.memory_space<smem>>
    %c4_i32 = arith.constant 4 : i32
    %23 = arith.muli %22, %c4_i32 : i32
    %c4_i32_18 = arith.constant 4 : i32
    %24 = arith.addi %23, %c4_i32_18 : i32
    %25 = tpu.iota {dimensions = array<i32: 1>} : vector<1x128xi32>
    %26 = vector.broadcast %23 : i32 to vector<1x128xi32>
    %27 = arith.cmpi sge, %25, %26 : vector<1x128xi32>
    %28 = vector.broadcast %24 : i32 to vector<1x128xi32>
    %29 = arith.cmpi slt, %25, %28 : vector<1x128xi32>
    %30 = arith.andi %27, %29 : vector<1x128xi1>
    %cst_19 = arith.constant -9.99999979E+10 : f32
    %31 = vector.shape_cast %30 : vector<1x128xi1> to vector<1x128xi1>
    %32 = vector.broadcast %31 : vector<1x128xi1> to vector<16x128xi1>
    %33 = vector.broadcast %cst_19 : f32 to vector<16x128xf32>
    %34 = arith.select %32, %21, %33 : vector<16x128xi1>, vector<16x128xf32>
    %c0_20 = arith.constant 0 : index
    %c0_21 = arith.constant 0 : index
    %35 = vector.load %arg9[%c0_20, %c0_21] : memref<16x128xf32, #tpu.memory_space<vmem>>, vector<16x128xf32>
    tpu.vector_store %arg9[%c0_20, %c0_21], %34 {strides = array<i32>} : memref<16x128xf32, #tpu.memory_space<vmem>>, vector<16x128xf32>,
    return
  }
  func.func @transform_0(%arg0: i32, %arg1: memref<1xi32, #tpu.memory_space<smem>>) -> (i32, i32) {
    %c0_i32 = arith.constant 0 : i32
    %c0_i32_0 = arith.constant 0 : i32
    return %arg0, %c0_i32 : i32, i32
  }
  func.func @transform_1(%arg0: i32, %arg1: memref<1xi32, #tpu.memory_space<smem>>) -> (i32, i32) {
    %c0_i32 = arith.constant 0 : i32
    %c0_i32_0 = arith.constant 0 : i32
    %c0_i32_1 = arith.constant 0 : i32
    return %c0_i32, %c0_i32_0 : i32, i32
  }
  func.func @transform_2(%arg0: i32, %arg1: memref<1xi32, #tpu.memory_space<smem>>) -> (i32, i32) {
    %c0_i32 = arith.constant 0 : i32
    %c0_i32_0 = arith.constant 0 : i32
    %c0_i32_1 = arith.constant 0 : i32
    return %c0_i32, %c0_i32_0 : i32, i32
  }
  func.func @transform_3(%arg0: i32, %arg1: memref<1xi32, #tpu.memory_space<smem>>) -> (i32, i32) {
    %c0_i32 = arith.constant 0 : i32
    %c0_i32_0 = arith.constant 0 : i32
    %c0_i32_1 = arith.constant 0 : i32
    return %c0_i32, %c0_i32_0 : i32, i32
  }
  func.func @transform_4(%arg0: i32, %arg1: memref<1xi32, #tpu.memory_space<smem>>) -> (i32, i32) {
    %c0_i32 = arith.constant 0 : i32
    %c0_i32_0 = arith.constant 0 : i32
    %c0_i32_1 = arith.constant 0 : i32
    return %c0_i32, %c0_i32_0 : i32, i32
  }
  func.func @transform_5(%arg0: i32, %arg1: memref<1xi32, #tpu.memory_space<smem>>) -> (i32, i32) {
    %c0_i32 = arith.constant 0 : i32
    %c0_i32_0 = arith.constant 0 : i32
    %c0_i32_1 = arith.constant 0 : i32
    return %c0_i32, %c0_i32_0 : i32, i32
  }
  func.func @transform_6(%arg0: i32, %arg1: memref<1xi32, #tpu.memory_space<smem>>) -> (i32, i32) {
    %c0_i32 = arith.constant 0 : i32
    %c0_i32_0 = arith.constant 0 : i32
    %c0_i32_1 = arith.constant 0 : i32
    return %c0_i32, %c0_i32_0 : i32, i32
  }
  func.func @transform_7(%arg0: i32, %arg1: memref<1xi32, #tpu.memory_space<smem>>) -> (i32, i32) {
    %c0_i32 = arith.constant 0 : i32
    %c0_i32_0 = arith.constant 0 : i32
    return %arg0, %c0_i32 : i32, i32
  }
}

module attributes {stable_mosaic.version = 11 : i64} {
  func.func @_net_forward_kernel(%arg0: i32, %arg1: memref<1xi32, #tpu.memory_space<smem>>, %arg2: memref<16x768xbf16, #tpu.memory_space<vmem>>, %arg3: memref<768x128xbf16, #tpu.memory_space<vmem>>, %arg4: memref<1x128xf32, #tpu.memory_space<vmem>>, %arg5: memref<128x128xbf16, #tpu.memory_space<vmem>>, %arg6: memref<1x128xf32, #tpu.memory_space<vmem>>, %arg7: memref<128x128xbf16, #tpu.memory_space<vmem>>, %arg8: memref<1x128xf32, #tpu.memory_space<vmem>>, %arg9: memref<16x128xf32, #tpu.memory_space<vmem>>) attributes {dimension_semantics = [#tpu.dimension_semantics<parallel>], iteration_bounds = array<i64: 1>, scalar_prefetch = 1 : i64, scratch_operands = 0 : i64, tpu.core_type = #tpu.core_type<tc>, window_params = [{transform_indices = @transform_0, window_bounds = array<i64: 16, 768>}, {pipeline_mode = #tpu.pipeline_mode<synchronous>, transform_indices = @transform_1, window_bounds = array<i64: 768, 128>}, {pipeline_mode = #tpu.pipeline_mode<synchronous>, transform_indices = @transform_2, window_bounds = array<i64: 1, 128>}, {pipeline_mode = #tpu.pipeline_mode<synchronous>, transform_indices = @transform_3, window_bounds = array<i64: 128, 128>}, {pipeline_mode = #tpu.pipeline_mode<synchronous>, transform_indices = @transform_4, window_bounds = array<i64: 1, 128>}, {pipeline_mode = #tpu.pipeline_mode<synchronous>, transform_indices = @transform_5, window_bounds = array<i64: 128, 128>}, {pipeline_mode = #tpu.pipeline_mode<synchronous>, transform_indices = @transform_6, window_bounds = array<i64: 1, 128>}, {transform_indices = @transform_7, window_bounds = array<i64: 16, 128>}]} {
    %c0 = arith.constant 0 : index
    %c0_0 = arith.constant 0 : index
    %0 = vector.load %arg2[%c0, %c0_0] : memref<16x768xbf16, #tpu.memory_space<vmem>>, vector<16x768xbf16>
    %c0_1 = arith.constant 0 : index
    %c0_2 = arith.constant 0 : index
    %1 = vector.load %arg3[%c0_1, %c0_2] : memref<768x128xbf16, #tpu.memory_space<vmem>>, vector<768x128xbf16>
    %cst = arith.constant dense<0.000000e+00> : vector<16x128xf32>
    %2 = tpu.matmul %0, %1, %cst {dimension_numbers = #tpu.dot_dimension_numbers<[1], [0], [0], [1], [0, 0, 1, 1], [], []>} : vector<16x768xbf16>, vector<768x128xbf16>, vector<16x128xf32> -> vector<16x128xf32>
    %c0_3 = arith.constant 0 : index
    %c0_4 = arith.constant 0 : index
    %3 = vector.load %arg4[%c0_3, %c0_4] : memref<1x128xf32, #tpu.memory_space<vmem>>, vector<1x128xf32>
    %4 = vector.broadcast %3 : vector<1x128xf32> to vector<16x128xf32>
    %5 = arith.addf %2, %4 : vector<16x128xf32>
    %cst_5 = arith.constant 0.000000e+00 : f32
    %6 = vector.broadcast %cst_5 : f32 to vector<16x128xf32>
    %7 = arith.maximumf %5, %6 : vector<16x128xf32>
    %8 = arith.truncf %7 : vector<16x128xf32> to vector<16x128xbf16>
    %c0_6 = arith.constant 0 : index
    %c0_7 = arith.constant 0 : index
    %9 = vector.load %arg5[%c0_6, %c0_7] : memref<128x128xbf16, #tpu.memory_space<vmem>>, vector<128x128xbf16>
    %cst_8 = arith.constant dense<0.000000e+00> : vector<16x128xf32>
    %10 = tpu.matmul %8, %9, %cst_8 {dimension_numbers = #tpu.dot_dimension_numbers<[1], [0], [0], [1], [0, 0, 1, 1], [], []>} : vector<16x128xbf16>, vector<128x128xbf16>, vector<16x128xf32> -> vector<16x128xf32>
    %c0_9 = arith.constant 0 : index
    %c0_10 = arith.constant 0 : index
    %11 = vector.load %arg6[%c0_9, %c0_10] : memref<1x128xf32, #tpu.memory_space<vmem>>, vector<1x128xf32>
    %12 = vector.broadcast %11 : vector<1x128xf32> to vector<16x128xf32>
    %13 = arith.addf %10, %12 : vector<16x128xf32>
    %cst_11 = arith.constant 0.000000e+00 : f32
    %14 = vector.broadcast %cst_11 : f32 to vector<16x128xf32>
    %15 = arith.maximumf %13, %14 : vector<16x128xf32>
    %16 = arith.truncf %15 : vector<16x128xf32> to vector<16x128xbf16>
    %c0_12 = arith.constant 0 : index
    %c0_13 = arith.constant 0 : index
    %17 = vector.load %arg7[%c0_12, %c0_13] : memref<128x128xbf16, #tpu.memory_space<vmem>>, vector<128x128xbf16>
    %cst_14 = arith.constant dense<0.000000e+00> : vector<16x128xf32>
    %18 = tpu.matmul %16, %17, %cst_14 {dimension_numbers = #tpu.dot_dimension_numbers<[1], [0], [0], [1], [0, 0, 1, 1], [], []>} : vector<16x128xbf16>, vector<128x128xbf16>, vector<16x128xf32> -> vector<16x128xf32>
    %c0_15 = arith.constant 0 : index
    %c0_16 = arith.constant 0 : index
    %19 = vector.load %arg8[%c0_15, %c0_16] : memref<1x128xf32, #tpu.memory_space<vmem>>, vector<1x128xf32>
    %20 = vector.broadcast %19 : vector<1x128xf32> to vector<16x128xf32>
    %21 = arith.addf %18, %20 : vector<16x128xf32>
    %c0_17 = arith.constant 0 : index
    %22 = memref.load %arg1[%c0_17] : memref<1xi32, #tpu.memory_space<smem>>
    %c4_i32 = arith.constant 4 : i32
    %23 = arith.muli %22, %c4_i32 : i32
    %c4_i32_18 = arith.constant 4 : i32
    %24 = arith.addi %23, %c4_i32_18 : i32
    %25 = tpu.iota {dimensions = array<i32: 1>} : vector<1x128xi32>
    %26 = vector.broadcast %23 : i32 to vector<1x128xi32>
    %27 = arith.cmpi sge, %25, %26 : vector<1x128xi32>
    %28 = vector.broadcast %24 : i32 to vector<1x128xi32>
    %29 = arith.cmpi slt, %25, %28 : vector<1x128xi32>
    %30 = arith.andi %27, %29 : vector<1x128xi1>
    %cst_19 = arith.constant -9.99999979E+10 : f32
    %31 = vector.shape_cast %30 : vector<1x128xi1> to vector<1x128xi1>
    %32 = vector.broadcast %31 : vector<1x128xi1> to vector<16x128xi1>
    %33 = vector.broadcast %cst_19 : f32 to vector<16x128xf32>
    %34 = arith.select %32, %21, %33 : vector<16x128xi1>, vector<16x128xf32>
    %c0_20 = arith.constant 0 : index
    %c0_21 = arith.constant 0 : index
    %35 = vector.load %arg9[%c0_20, %c0_21] : memref<16x128xf32, #tpu.memory_space<vmem>>, vector<16x128xf32>
    tpu.vector_store %arg9[%c0_20, %c0_21], %34 {strides = array<i32>} : memref<16x128xf32, #tpu.memory_space<vmem>>, vector<16x128xf32>,
    return
  }
  func.func @transform_0(%arg0: i32, %arg1: memref<1xi32, #tpu.memory_space<smem>>) -> (i32, i32) {
    %c0_i32 = arith.constant 0 : i32
    %c0_i32_0 = arith.constant 0 : i32
    return %arg0, %c0_i32 : i32, i32
  }
  func.func @transform_1(%arg0: i32, %arg1: memref<1xi32, #tpu.memory_space<smem>>) -> (i32, i32) {
    %c0_i32 = arith.constant 0 : i32
    %c0_i32_0 = arith.constant 0 : i32
    %c0_i32_1 = arith.constant 0 : i32
    return %c0_i32, %c0_i32_0 : i32, i32
  }
  func.func @transform_2(%arg0: i32, %arg1: memref<1xi32, #tpu.memory_space<smem>>) -> (i32, i32) {
    %c0_i32 = arith.constant 0 : i32
    %c0_i32_0 = arith.constant 0 : i32
    %c0_i32_1 = arith.constant 0 : i32
    return %c0_i32, %c0_i32_0 : i32, i32
  }
  func.func @transform_3(%arg0: i32, %arg1: memref<1xi32, #tpu.memory_space<smem>>) -> (i32, i32) {
    %c0_i32 = arith.constant 0 : i32
    %c0_i32_0 = arith.constant 0 : i32
    %c0_i32_1 = arith.constant 0 : i32
    return %c0_i32, %c0_i32_0 : i32, i32
  }
  func.func @transform_4(%arg0: i32, %arg1: memref<1xi32, #tpu.memory_space<smem>>) -> (i32, i32) {
    %c0_i32 = arith.constant 0 : i32
    %c0_i32_0 = arith.constant 0 : i32
    %c0_i32_1 = arith.constant 0 : i32
    return %c0_i32, %c0_i32_0 : i32, i32
  }
  func.func @transform_5(%arg0: i32, %arg1: memref<1xi32, #tpu.memory_space<smem>>) -> (i32, i32) {
    %c0_i32 = arith.constant 0 : i32
    %c0_i32_0 = arith.constant 0 : i32
    %c0_i32_1 = arith.constant 0 : i32
    return %c0_i32, %c0_i32_0 : i32, i32
  }
  func.func @transform_6(%arg0: i32, %arg1: memref<1xi32, #tpu.memory_space<smem>>) -> (i32, i32) {
    %c0_i32 = arith.constant 0 : i32
    %c0_i32_0 = arith.constant 0 : i32
    %c0_i32_1 = arith.constant 0 : i32
    return %c0_i32, %c0_i32_0 : i32, i32
  }
  func.func @transform_7(%arg0: i32, %arg1: memref<1xi32, #tpu.memory_space<smem>>) -> (i32, i32) {
    %c0_i32 = arith.constant 0 : i32
    %c0_i32_0 = arith.constant 0 : i32
    return %arg0, %c0_i32 : i32, i32
  }
}

</mosaic_0001>

<llo_original>
// kernel: tpu_custom_call.1
$region0: #{tpu_custom_call.1}
  #allocation0 [shape = 'u32[]', space=smem, size = 0x4, offset = 0x4, fixed_abs, tag = 'smem constant byte address 0x4 - core index']
  #allocation1 [shape = 'u32[144,128]{1,0:T(1,128)}', space=vmem, size = 0x12000, scoped, tag = 'internal scratch']
  #allocation2 [shape = 's32[1]{0}', space=sflag, size = 0x4, scoped, tag = 'scoped memory for tpu_custom_call.1']
  #allocation3 [shape = 's32[1]{0:T(128)S(6)}', space=smem, size = 0x200, scoped, tag = 'prefetched SMEM operand 0']
  %s0 = inlined_call_operand.<no memory space> [shape: s32[1], index: 0, kind: input, shape index: {}]
  %s1 = inlined_call_operand.hbm [shape: bf16[16,768], index: 1, kind: input, shape index: {}]
  %s2 = inlined_call_operand.hbm [shape: bf16[768,128], index: 2, kind: input, shape index: {}]
  %s3 = inlined_call_operand.vmem [shape: f32[1,128], index: 3, kind: input, shape index: {}]
  %s4 = inlined_call_operand.hbm [shape: bf16[128,128], index: 4, kind: input, shape index: {}]
  %s5 = inlined_call_operand.vmem [shape: f32[1,128], index: 5, kind: input, shape index: {}]
  %s6 = inlined_call_operand.hbm [shape: bf16[128,128], index: 6, kind: input, shape index: {}]
  %s7 = inlined_call_operand.vmem [shape: f32[1,128], index: 7, kind: input, shape index: {}]
  %s8 = inlined_call_operand.hbm [shape: f32[16,128], index: 8, kind: output, shape index: {}]
  %s9 = sld [smem:[#allocation0]]
  $region54: #{tpu_custom_call.1} parent=0
    _
  %s11 = ssub.s32 1, %s9
  %s12 = scalar_select 0, %s11, %s9
  %13 = sst [smem:[#allocation3]] %s0
  $region1: #{tpu_custom_call.1} parent=0
    #allocation4 [shape = 'u8[24576]{0}', space=vmem, size = 0x6000, scoped, tag = 'input window, operand 1, single buffered']
    #allocation5 [shape = 's32[1]{0}', space=sflag, size = 0x4, scoped, tag = 'scoped memory for tpu_custom_call.1']
    #allocation6 [shape = 's32[1]{0}', space=sflag, size = 0x4, scoped, tag = 'scoped memory for tpu_custom_call.1']
    #allocation7 [shape = 'u8[196608]{0}', space=vmem, size = 0x30000, scoped, tag = 'input window, operand 2, single buffered']
    #allocation8 [shape = 's32[1]{0}', space=sflag, size = 0x4, scoped, tag = 'scoped memory for tpu_custom_call.1']
    #allocation9 [shape = 'u8[32768]{0}', space=vmem, size = 0x8000, scoped, tag = 'input window, operand 4, single buffered']
    #allocation10 [shape = 'u8[32768]{0}', space=vmem, size = 0x8000, scoped, tag = 'input window, operand 6, single buffered']
    #allocation11 [shape = 's32[1]{0}', space=sflag, size = 0x4, scoped, tag = 'scoped memory for tpu_custom_call.1']
    #allocation12 [shape = 'u8[8192]{0}', space=vmem, size = 0x2000, scoped, tag = 'output window, operand 0, single buffered']
    %14 = vsyncpa [#allocation5], 0
    %15 = vsyncpa [#allocation8], 0
    %16 = vsyncpa [#allocation11], 0
    %17 = vsyncpa [#allocation6], 0
    // Predicated region
    $region2: #{tpu_custom_call.1} parent=1 // pred_check
      _
    $region3: #{tpu_custom_call.1} parent=1 // pred_check_branch
      %19 = sbr.rel (0) target = $region5
    $region4: #{tpu_custom_call.1} parent=1 // pred_region
      %s21 = ssub.s32 768, 768
      %22 = vsyncadd [#allocation5], %s21
      %s23 = sshll.u32 [#allocation4], 4
      %s24 = int_to_ptr.vmem [resolvable:$true] %s23
      %29 = dma.hbm_to_vmem [thread:$0]  %s1, 768, %s24, [#allocation5], 384, 384, 24
    $region5: #{tpu_custom_call.1} parent=1 // pred_fallthru
      _
    // Predicated region
    $region6: #{tpu_custom_call.1} parent=1 // pred_check
      _
    $region7: #{tpu_custom_call.1} parent=1 // pred_check_branch
      %31 = sbr.rel (0) target = $region9
    $region8: #{tpu_custom_call.1} parent=1 // pred_region
      %s33 = ssub.s32 6144, 6144
      %34 = vsyncadd [#allocation8], %s33
      %s35 = sshll.u32 [#allocation7], 4
      %s36 = int_to_ptr.vmem [resolvable:$true] %s35
      %41 = dma.hbm_to_vmem [thread:$0]  %s2, 6144, %s36, [#allocation8], 64, 64, 4
    $region9: #{tpu_custom_call.1} parent=1 // pred_fallthru
      _
    // Predicated region
    $region10: #{tpu_custom_call.1} parent=1 // pred_check
      _
    $region11: #{tpu_custom_call.1} parent=1 // pred_check_branch
      %43 = sbr.rel (0) target = $region13
    $region12: #{tpu_custom_call.1} parent=1 // pred_region
      _
    $region13: #{tpu_custom_call.1} parent=1 // pred_fallthru
      _
    // Predicated region
    $region14: #{tpu_custom_call.1} parent=1 // pred_check
      _
    $region15: #{tpu_custom_call.1} parent=1 // pred_check_branch
      %45 = sbr.rel (0) target = $region17
    $region16: #{tpu_custom_call.1} parent=1 // pred_region
      %s47 = ssub.s32 1024, 1024
      %48 = vsyncadd [#allocation8], %s47
      %s49 = sshll.u32 [#allocation9], 4
      %s50 = int_to_ptr.vmem [resolvable:$true] %s49
      %55 = dma.hbm_to_vmem [thread:$0]  %s4, 1024, %s50, [#allocation8], 64, 64, 4
    $region17: #{tpu_custom_call.1} parent=1 // pred_fallthru
      _
    // Predicated region
    $region18: #{tpu_custom_call.1} parent=1 // pred_check
      _
    $region19: #{tpu_custom_call.1} parent=1 // pred_check_branch
      %57 = sbr.rel (0) target = $region21
    $region20: #{tpu_custom_call.1} parent=1 // pred_region
      _
    $region21: #{tpu_custom_call.1} parent=1 // pred_fallthru
      _
    // Predicated region
    $region22: #{tpu_custom_call.1} parent=1 // pred_check
      _
    $region23: #{tpu_custom_call.1} parent=1 // pred_check_branch
      %59 = sbr.rel (0) target = $region25
    $region24: #{tpu_custom_call.1} parent=1 // pred_region
      %s61 = ssub.s32 1024, 1024
      %62 = vsyncadd [#allocation11], %s61
      %s63 = sshll.u32 [#allocation10], 4
      %s64 = int_to_ptr.vmem [resolvable:$true] %s63
      %69 = dma.hbm_to_vmem [thread:$0]  %s6, 1024, %s64, [#allocation11], 64, 64, 4
    $region25: #{tpu_custom_call.1} parent=1 // pred_fallthru
      _
    // Predicated region
    $region26: #{tpu_custom_call.1} parent=1 // pred_check
      _
    $region27: #{tpu_custom_call.1} parent=1 // pred_check_branch
      %71 = sbr.rel (0) target = $region29
    $region28: #{tpu_custom_call.1} parent=1 // pred_region
      _
    $region29: #{tpu_custom_call.1} parent=1 // pred_fallthru
      _
    // Predicated region
    $region30: #{tpu_custom_call.1} parent=1 // pred_check
      _
    $region31: #{tpu_custom_call.1} parent=1 // pred_check_branch
      %73 = sbr.rel (0) target = $region33
    $region32: #{tpu_custom_call.1} parent=1 // pred_region
      %74 = dma.done [#allocation5], 768
    $region33: #{tpu_custom_call.1} parent=1 // pred_fallthru
      _
    // Predicated region
    $region34: #{tpu_custom_call.1} parent=1 // pred_check
      _
    $region35: #{tpu_custom_call.1} parent=1 // pred_check_branch
      %76 = sbr.rel (0) target = $region37
    $region36: #{tpu_custom_call.1} parent=1 // pred_region
      %77 = dma.done [#allocation8], 6144
    $region37: #{tpu_custom_call.1} parent=1 // pred_fallthru
      _
    // Predicated region
    $region38: #{tpu_custom_call.1} parent=1 // pred_check
      _
    $region39: #{tpu_custom_call.1} parent=1 // pred_check_branch
      %79 = sbr.rel (0) target = $region41
    $region40: #{tpu_custom_call.1} parent=1 // pred_region
      %80 = dma.done [#allocation8], 1024
    $region41: #{tpu_custom_call.1} parent=1 // pred_fallthru
      _
    // Predicated region
    $region42: #{tpu_custom_call.1} parent=1 // pred_check
      _
    $region43: #{tpu_custom_call.1} parent=1 // pred_check_branch
      %82 = sbr.rel (0) target = $region45
    $region44: #{tpu_custom_call.1} parent=1 // pred_region
      %83 = dma.done [#allocation11], 1024
    $region45: #{tpu_custom_call.1} parent=1 // pred_fallthru
      _
    %v85 = vld [vmem:[#allocation4] sm:$0xff]
    %v86 = vld [vmem:[#allocation4 + $0x8] sm:$0xff]
    %v87 = vld [vmem:[#allocation4 + $0x10] sm:$0xff]
    %v88 = vld [vmem:[#allocation4 + $0x18] sm:$0xff]
    %v89 = vld [vmem:[#allocation4 + $0x20] sm:$0xff]
    %v90 = vld [vmem:[#allocation4 + $0x28] sm:$0xff]
    %v91 = vld [vmem:[#allocation7] sm:$0xf]
    %v92 = vld [vmem:[#allocation7 + $0x4] sm:$0xf]
    %v93 = vld [vmem:[#allocation7 + $0x8] sm:$0xf]
    %v94 = vld [vmem:[#allocation7 + $0xc] sm:$0xf]
    %v95 = vld [vmem:[#allocation7 + $0x10] sm:$0xf]
    %v96 = vld [vmem:[#allocation7 + $0x14] sm:$0xf]
    %v97 = vld [vmem:[#allocation7 + $0x18] sm:$0xf]
    %v98 = vld [vmem:[#allocation7 + $0x1c] sm:$0xf]
    %v99 = vld [vmem:[#allocation7 + $0x20] sm:$0xf]
    %v100 = vld [vmem:[#allocation7 + $0x24] sm:$0xf]
    %v101 = vld [vmem:[#allocation7 + $0x28] sm:$0xf]
    %v102 = vld [vmem:[#allocation7 + $0x2c] sm:$0xf]
    %v103 = vld [vmem:[#allocation7 + $0x30] sm:$0xf]
    %v104 = vld [vmem:[#allocation7 + $0x34] sm:$0xf]
    %v105 = vld [vmem:[#allocation7 + $0x38] sm:$0xf]
    %v106 = vld [vmem:[#allocation7 + $0x3c] sm:$0xf]
    %v107 = vld [vmem:[#allocation7 + $0x40] sm:$0xf]
    %v108 = vld [vmem:[#allocation7 + $0x44] sm:$0xf]
    %v109 = vld [vmem:[#allocation7 + $0x48] sm:$0xf]
    %v110 = vld [vmem:[#allocation7 + $0x4c] sm:$0xf]
    %v111 = vld [vmem:[#allocation7 + $0x50] sm:$0xf]
    %v112 = vld [vmem:[#allocation7 + $0x54] sm:$0xf]
    %v113 = vld [vmem:[#allocation7 + $0x58] sm:$0xf]
    %v114 = vld [vmem:[#allocation7 + $0x5c] sm:$0xf]
    %v115 = vld [vmem:[#allocation7 + $0x60] sm:$0xf]
    %v116 = vld [vmem:[#allocation7 + $0x64] sm:$0xf]
    %v117 = vld [vmem:[#allocation7 + $0x68] sm:$0xf]
    %v118 = vld [vmem:[#allocation7 + $0x6c] sm:$0xf]
    %v119 = vld [vmem:[#allocation7 + $0x70] sm:$0xf]
    %v120 = vld [vmem:[#allocation7 + $0x74] sm:$0xf]
    %v121 = vld [vmem:[#allocation7 + $0x78] sm:$0xf]
    %v122 = vld [vmem:[#allocation7 + $0x7c] sm:$0xf]
    %v123 = vld [vmem:[#allocation7 + $0x80] sm:$0xf]
    %v124 = vld [vmem:[#allocation7 + $0x84] sm:$0xf]
    %v125 = vld [vmem:[#allocation7 + $0x88] sm:$0xf]
    %v126 = vld [vmem:[#allocation7 + $0x8c] sm:$0xf]
    %v127 = vld [vmem:[#allocation7 + $0x90] sm:$0xf]
    %v128 = vld [vmem:[#allocation7 + $0x94] sm:$0xf]
    %v129 = vld [vmem:[#allocation7 + $0x98] sm:$0xf]
    %v130 = vld [vmem:[#allocation7 + $0x9c] sm:$0xf]
    %v131 = vld [vmem:[#allocation7 + $0xa0] sm:$0xf]
    %v132 = vld [vmem:[#allocation7 + $0xa4] sm:$0xf]
    %v133 = vld [vmem:[#allocation7 + $0xa8] sm:$0xf]
    %v134 = vld [vmem:[#allocation7 + $0xac] sm:$0xf]
    %v135 = vld [vmem:[#allocation7 + $0xb0] sm:$0xf]
    %v136 = vld [vmem:[#allocation7 + $0xb4] sm:$0xf]
    %v137 = vld [vmem:[#allocation7 + $0xb8] sm:$0xf]
    %v138 = vld [vmem:[#allocation7 + $0xbc] sm:$0xf]
    %v139 = vld [vmem:[#allocation7 + $0xc0] sm:$0xf]
    %v140 = vld [vmem:[#allocation7 + $0xc4] sm:$0xf]
    %v141 = vld [vmem:[#allocation7 + $0xc8] sm:$0xf]
    %v142 = vld [vmem:[#allocation7 + $0xcc] sm:$0xf]
    %v143 = vld [vmem:[#allocation7 + $0xd0] sm:$0xf]
    %v144 = vld [vmem:[#allocation7 + $0xd4] sm:$0xf]
    %v145 = vld [vmem:[#allocation7 + $0xd8] sm:$0xf]
    %v146 = vld [vmem:[#allocation7 + $0xdc] sm:$0xf]
    %v147 = vld [vmem:[#allocation7 + $0xe0] sm:$0xf]
    %v148 = vld [vmem:[#allocation7 + $0xe4] sm:$0xf]
    %v149 = vld [vmem:[#allocation7 + $0xe8] sm:$0xf]
    %v150 = vld [vmem:[#allocation7 + $0xec] sm:$0xf]
    %v151 = vld [vmem:[#allocation7 + $0xf0] sm:$0xf]
    %v152 = vld [vmem:[#allocation7 + $0xf4] sm:$0xf]
    %v153 = vld [vmem:[#allocation7 + $0xf8] sm:$0xf]
    %v154 = vld [vmem:[#allocation7 + $0xfc] sm:$0xf]
    %v155 = vld [vmem:[#allocation7 + $0x100] sm:$0xf]
    %v156 = vld [vmem:[#allocation7 + $0x104] sm:$0xf]
    %v157 = vld [vmem:[#allocation7 + $0x108] sm:$0xf]
    %v158 = vld [vmem:[#allocation7 + $0x10c] sm:$0xf]
    %v159 = vld [vmem:[#allocation7 + $0x110] sm:$0xf]
    %v160 = vld [vmem:[#allocation7 + $0x114] sm:$0xf]
    %v161 = vld [vmem:[#allocation7 + $0x118] sm:$0xf]
    %v162 = vld [vmem:[#allocation7 + $0x11c] sm:$0xf]
    %v163 = vld [vmem:[#allocation7 + $0x120] sm:$0xf]
    %v164 = vld [vmem:[#allocation7 + $0x124] sm:$0xf]
    %v165 = vld [vmem:[#allocation7 + $0x128] sm:$0xf]
    %v166 = vld [vmem:[#allocation7 + $0x12c] sm:$0xf]
    %v167 = vld [vmem:[#allocation7 + $0x130] sm:$0xf]
    %v168 = vld [vmem:[#allocation7 + $0x134] sm:$0xf]
    %v169 = vld [vmem:[#allocation7 + $0x138] sm:$0xf]
    %v170 = vld [vmem:[#allocation7 + $0x13c] sm:$0xf]
    %v171 = vld [vmem:[#allocation7 + $0x140] sm:$0xf]
    %v172 = vld [vmem:[#allocation7 + $0x144] sm:$0xf]
    %v173 = vld [vmem:[#allocation7 + $0x148] sm:$0xf]
    %v174 = vld [vmem:[#allocation7 + $0x14c] sm:$0xf]
    %v175 = vld [vmem:[#allocation7 + $0x150] sm:$0xf]
    %v176 = vld [vmem:[#allocation7 + $0x154] sm:$0xf]
    %v177 = vld [vmem:[#allocation7 + $0x158] sm:$0xf]
    %v178 = vld [vmem:[#allocation7 + $0x15c] sm:$0xf]
    %v179 = vld [vmem:[#allocation7 + $0x160] sm:$0xf]
    %v180 = vld [vmem:[#allocation7 + $0x164] sm:$0xf]
    %v181 = vld [vmem:[#allocation7 + $0x168] sm:$0xf]
    %v182 = vld [vmem:[#allocation7 + $0x16c] sm:$0xf]
    %v183 = vld [vmem:[#allocation7 + $0x170] sm:$0xf]
    %v184 = vld [vmem:[#allocation7 + $0x174] sm:$0xf]
    %v185 = vld [vmem:[#allocation7 + $0x178] sm:$0xf]
    %v186 = vld [vmem:[#allocation7 + $0x17c] sm:$0xf]
    %v187 = vld [vmem:[%s3] sm:$0x1]
    %v189 = vlaneseq
    %v190 = vshrl.u32 %v189, 7
    %v191 = vsub.s32 0, %v190
    %v192 = vrot.slane %v187, %v191
    %v200 = vunpack.c.l.b16 %v85
    %v201 = vunpack.c.h.b16 %v85
    %v202 = vunpack.c.l.b16 %v86
    %v203 = vunpack.c.h.b16 %v86
    %v204 = vunpack.c.l.b16 %v87
    %v205 = vunpack.c.h.b16 %v87
    %v206 = vunpack.c.l.b16 %v88
    %v207 = vunpack.c.h.b16 %v88
    %v208 = vunpack.c.l.b16 %v89
    %v209 = vunpack.c.h.b16 %v89
    %v210 = vunpack.c.l.b16 %v90
    %v211 = vunpack.c.h.b16 %v90
    %v212 = vpack.c.b16 %v206, %v200
    %v213 = vpack.c.b16 %v207, %v201
    %v214 = vpack.c.b16 %v208, %v202
    %v215 = vpack.c.b16 %v209, %v203
    %v216 = vpack.c.b16 %v210, %v204
    %v217 = vpack.c.b16 %v211, %v205
    %v320 = vunpack.c.l.b16 %v91
    %v321 = vunpack.c.l.b16 %v92
    %v322 = vunpack.c.l.b16 %v93
    %v323 = vunpack.c.l.b16 %v94
    %v324 = vunpack.c.l.b16 %v95
    %v325 = vunpack.c.l.b16 %v96
    %v326 = vunpack.c.l.b16 %v97
    %v327 = vunpack.c.l.b16 %v98
    %v328 = vunpack.c.l.b16 %v99
    %v329 = vunpack.c.l.b16 %v100
    %v330 = vunpack.c.l.b16 %v101
    %v331 = vunpack.c.l.b16 %v102
    %v332 = vunpack.c.l.b16 %v103
    %v333 = vunpack.c.l.b16 %v104
    %v334 = vunpack.c.l.b16 %v105
    %v335 = vunpack.c.l.b16 %v106
    %v336 = vunpack.c.l.b16 %v107
    %v337 = vunpack.c.l.b16 %v108
    %v338 = vunpack.c.l.b16 %v109
    %v339 = vunpack.c.l.b16 %v110
    %v340 = vunpack.c.l.b16 %v111
    %v341 = vunpack.c.l.b16 %v112
    %v342 = vunpack.c.l.b16 %v113
    %v343 = vunpack.c.l.b16 %v114
    %v344 = vunpack.c.l.b16 %v115
    %v345 = vunpack.c.l.b16 %v116
    %v346 = vunpack.c.l.b16 %v117
    %v347 = vunpack.c.l.b16 %v118
    %v348 = vunpack.c.l.b16 %v119
    %v349 = vunpack.c.l.b16 %v120
    %v350 = vunpack.c.l.b16 %v121
    %v351 = vunpack.c.l.b16 %v122
    %v352 = vunpack.c.l.b16 %v123
    %v353 = vunpack.c.l.b16 %v124
    %v354 = vunpack.c.l.b16 %v125
    %v355 = vunpack.c.l.b16 %v126
    %v356 = vunpack.c.l.b16 %v127
    %v357 = vunpack.c.l.b16 %v128
    %v358 = vunpack.c.l.b16 %v129
    %v359 = vunpack.c.l.b16 %v130
    %v360 = vunpack.c.l.b16 %v131
    %v361 = vunpack.c.l.b16 %v132
    %v362 = vunpack.c.l.b16 %v133
    %v363 = vunpack.c.l.b16 %v134
    %v364 = vunpack.c.l.b16 %v135
    %v365 = vunpack.c.l.b16 %v136
    %v366 = vunpack.c.l.b16 %v137
    %v367 = vunpack.c.l.b16 %v138
    %v368 = vunpack.c.l.b16 %v139
    %v369 = vunpack.c.l.b16 %v140
    %v370 = vunpack.c.l.b16 %v141
    %v371 = vunpack.c.l.b16 %v142
    %v372 = vunpack.c.l.b16 %v143
    %v373 = vunpack.c.l.b16 %v144
    %v374 = vunpack.c.l.b16 %v145
    %v375 = vunpack.c.l.b16 %v146
    %v376 = vunpack.c.l.b16 %v147
    %v377 = vunpack.c.l.b16 %v148
    %v378 = vunpack.c.l.b16 %v149
    %v379 = vunpack.c.l.b16 %v150
    %v380 = vunpack.c.l.b16 %v151
    %v381 = vunpack.c.l.b16 %v152
    %v382 = vunpack.c.l.b16 %v153
    %v383 = vunpack.c.l.b16 %v154
    %v384 = vunpack.c.l.b16 %v155
    %v385 = vunpack.c.l.b16 %v156
    %v386 = vunpack.c.l.b16 %v157
    %v387 = vunpack.c.l.b16 %v158
    %v388 = vunpack.c.l.b16 %v159
    %v389 = vunpack.c.l.b16 %v160
    %v390 = vunpack.c.l.b16 %v161
    %v391 = vunpack.c.l.b16 %v162
    %v392 = vunpack.c.l.b16 %v163
    %v393 = vunpack.c.l.b16 %v164
    %v394 = vunpack.c.l.b16 %v165
    %v395 = vunpack.c.l.b16 %v166
    %v396 = vunpack.c.l.b16 %v167
    %v397 = vunpack.c.l.b16 %v168
    %v398 = vunpack.c.l.b16 %v169
    %v399 = vunpack.c.l.b16 %v170
    %v400 = vunpack.c.l.b16 %v171
    %v401 = vunpack.c.l.b16 %v172
    %v402 = vunpack.c.l.b16 %v173
    %v403 = vunpack.c.l.b16 %v174
    %v404 = vunpack.c.l.b16 %v175
    %v405 = vunpack.c.l.b16 %v176
    %v406 = vunpack.c.l.b16 %v177
    %v407 = vunpack.c.l.b16 %v178
    %v408 = vunpack.c.l.b16 %v179
    %v409 = vunpack.c.l.b16 %v180
    %v410 = vunpack.c.l.b16 %v181
    %v411 = vunpack.c.l.b16 %v182
    %v412 = vunpack.c.l.b16 %v183
    %v413 = vunpack.c.l.b16 %v184
    %v414 = vunpack.c.l.b16 %v185
    %v415 = vunpack.c.l.b16 %v186
    %v416 = vpack.c.b16 %v321, %v320
    %v417 = vpack.c.b16 %v323, %v322
    %v418 = vpack.c.b16 %v325, %v324
    %v419 = vpack.c.b16 %v327, %v326
    %v420 = vpack.c.b16 %v329, %v328
    %v421 = vpack.c.b16 %v331, %v330
    %v422 = vpack.c.b16 %v333, %v332
    %v423 = vpack.c.b16 %v335, %v334
    %v424 = vpack.c.b16 %v337, %v336
    %v425 = vpack.c.b16 %v339, %v338
    %v426 = vpack.c.b16 %v341, %v340
    %v427 = vpack.c.b16 %v343, %v342
    %v428 = vpack.c.b16 %v345, %v344
    %v429 = vpack.c.b16 %v347, %v346
    %v430 = vpack.c.b16 %v349, %v348
    %v431 = vpack.c.b16 %v351, %v350
    %v432 = vpack.c.b16 %v353, %v352
    %v433 = vpack.c.b16 %v355, %v354
    %v434 = vpack.c.b16 %v357, %v356
    %v435 = vpack.c.b16 %v359, %v358
    %v436 = vpack.c.b16 %v361, %v360
    %v437 = vpack.c.b16 %v363, %v362
    %v438 = vpack.c.b16 %v365, %v364
    %v439 = vpack.c.b16 %v367, %v366
    %v440 = vpack.c.b16 %v369, %v368
    %v441 = vpack.c.b16 %v371, %v370
    %v442 = vpack.c.b16 %v373, %v372
    %v443 = vpack.c.b16 %v375, %v374
    %v444 = vpack.c.b16 %v377, %v376
    %v445 = vpack.c.b16 %v379, %v378
    %v446 = vpack.c.b16 %v381, %v380
    %v447 = vpack.c.b16 %v383, %v382
    %v448 = vpack.c.b16 %v385, %v384
    %v449 = vpack.c.b16 %v387, %v386
    %v450 = vpack.c.b16 %v389, %v388
    %v451 = vpack.c.b16 %v391, %v390
    %v452 = vpack.c.b16 %v393, %v392
    %v453 = vpack.c.b16 %v395, %v394
    %v454 = vpack.c.b16 %v397, %v396
    %v455 = vpack.c.b16 %v399, %v398
    %v456 = vpack.c.b16 %v401, %v400
    %v457 = vpack.c.b16 %v403, %v402
    %v458 = vpack.c.b16 %v405, %v404
    %v459 = vpack.c.b16 %v407, %v406
    %v460 = vpack.c.b16 %v409, %v408
    %v461 = vpack.c.b16 %v411, %v410
    %v462 = vpack.c.b16 %v413, %v412
    %v463 = vpack.c.b16 %v415, %v414
    %512 = vmatprep.subr.bf16.mxu0 0
    %513 = vmatpush1.bf16.msra.mxu0 %v416
    %514 = vmatprep.subr.bf16.mxu0 0
    %515 = vmatpush1.bf16.msra.mxu0 %v417
    %516 = vmatprep.subr.bf16.mxu0 0
    %517 = vmatpush1.bf16.msra.mxu0 %v418
    %518 = vmatprep.subr.bf16.mxu0 0
    %519 = vmatpush1.bf16.msra.mxu0 %v419
    %520 = vmatprep.subr.bf16.mxu0 0
    %521 = vmatpush1.bf16.msra.mxu0 %v420
    %522 = vmatprep.subr.bf16.mxu0 0
    %523 = vmatpush1.bf16.msra.mxu0 %v421
    %524 = vmatprep.subr.bf16.mxu0 0
    %525 = vmatpush1.bf16.msra.mxu0 %v422
    %526 = vmatprep.subr.bf16.mxu0 0
    %527 = vmatpush1.bf16.msra.mxu0 %v423
    %528 = vmatprep.subr.bf16.mxu0 0
    %529 = vmatpush1.bf16.msra.mxu0 %v424
    %530 = vmatprep.subr.bf16.mxu0 0
    %531 = vmatpush1.bf16.msra.mxu0 %v425
    %532 = vmatprep.subr.bf16.mxu0 0
    %533 = vmatpush1.bf16.msra.mxu0 %v426
    %534 = vmatprep.subr.bf16.mxu0 0
    %535 = vmatpush1.bf16.msra.mxu0 %v427
    %536 = vmatprep.subr.bf16.mxu0 0
    %537 = vmatpush1.bf16.msra.mxu0 %v428
    %538 = vmatprep.subr.bf16.mxu0 0
    %539 = vmatpush1.bf16.msra.mxu0 %v429
    %540 = vmatprep.subr.bf16.mxu0 0
    %541 = vmatpush1.bf16.msra.mxu0 %v430
    %542 = vmatprep.subr.bf16.mxu0 0
    %543 = vmatpush1.bf16.msra.mxu0 %v431
    %544 = vmatprep.mubr.bf16.mxu0 %v213
    %545 = vmatmul.mubr.bf16.gmra.mrb[0].mxu0 %v212
    %v546 = vpop.f32.mrb[0].mxu0
    %v547 = vadd.f32 %v192, %v546
    %v548 = vpop.f32.mrb[0].mxu0
    %v549 = vpop.f32.mrb[0].mxu0
    %v550 = vadd.f32 %v192, %v549
    %v551 = vpop.f32.mrb[0].mxu0
    %552 = vdwg.mxu0
    %553 = vmatprep.subr.bf16.mxu0 0
    %554 = vmatpush1.bf16.msra.mxu0 %v432
    %555 = vmatprep.subr.bf16.mxu0 0
    %556 = vmatpush1.bf16.msra.mxu0 %v433
    %557 = vmatprep.subr.bf16.mxu0 0
    %558 = vmatpush1.bf16.msra.mxu0 %v434
    %559 = vmatprep.subr.bf16.mxu0 0
    %560 = vmatpush1.bf16.msra.mxu0 %v435
    %561 = vmatprep.subr.bf16.mxu0 0
    %562 = vmatpush1.bf16.msra.mxu0 %v436
    %563 = vmatprep.subr.bf16.mxu0 0
    %564 = vmatpush1.bf16.msra.mxu0 %v437
    %565 = vmatprep.subr.bf16.mxu0 0
    %566 = vmatpush1.bf16.msra.mxu0 %v438
    %567 = vmatprep.subr.bf16.mxu0 0
    %568 = vmatpush1.bf16.msra.mxu0 %v439
    %569 = vmatprep.subr.bf16.mxu0 0
    %570 = vmatpush1.bf16.msra.mxu0 %v440
    %571 = vmatprep.subr.bf16.mxu0 0
    %572 = vmatpush1.bf16.msra.mxu0 %v441
    %573 = vmatprep.subr.bf16.mxu0 0
    %574 = vmatpush1.bf16.msra.mxu0 %v442
    %575 = vmatprep.subr.bf16.mxu0 0
    %576 = vmatpush1.bf16.msra.mxu0 %v443
    %577 = vmatprep.subr.bf16.mxu0 0
    %578 = vmatpush1.bf16.msra.mxu0 %v444
    %579 = vmatprep.subr.bf16.mxu0 0
    %580 = vmatpush1.bf16.msra.mxu0 %v445
    %581 = vmatprep.subr.bf16.mxu0 0
    %582 = vmatpush1.bf16.msra.mxu0 %v446
    %583 = vmatprep.subr.bf16.mxu0 0
    %584 = vmatpush1.bf16.msra.mxu0 %v447
    %585 = vmatprep.mubr.bf16.mxu0 %v215
    %586 = vmatmul.mubr.bf16.gmra.mrb[0].mxu0 %v214
    %v587 = vpop.f32.mrb[0].mxu0
    %v588 = vadd.f32 %v547, %v587
    %v589 = vpop.f32.mrb[0].mxu0
    %v590 = vpop.f32.mrb[0].mxu0
    %v591 = vadd.f32 %v550, %v590
    %v592 = vpop.f32.mrb[0].mxu0
    %593 = vdwg.mxu0
    %594 = vmatprep.subr.bf16.mxu0 0
    %595 = vmatpush1.bf16.msra.mxu0 %v448
    %596 = vmatprep.subr.bf16.mxu0 0
    %597 = vmatpush1.bf16.msra.mxu0 %v449
    %598 = vmatprep.subr.bf16.mxu0 0
    %599 = vmatpush1.bf16.msra.mxu0 %v450
    %600 = vmatprep.subr.bf16.mxu0 0
    %601 = vmatpush1.bf16.msra.mxu0 %v451
    %602 = vmatprep.subr.bf16.mxu0 0
    %603 = vmatpush1.bf16.msra.mxu0 %v452
    %604 = vmatprep.subr.bf16.mxu0 0
    %605 = vmatpush1.bf16.msra.mxu0 %v453
    %606 = vmatprep.subr.bf16.mxu0 0
    %607 = vmatpush1.bf16.msra.mxu0 %v454
    %608 = vmatprep.subr.bf16.mxu0 0
    %609 = vmatpush1.bf16.msra.mxu0 %v455
    %610 = vmatprep.subr.bf16.mxu0 0
    %611 = vmatpush1.bf16.msra.mxu0 %v456
    %612 = vmatprep.subr.bf16.mxu0 0
    %613 = vmatpush1.bf16.msra.mxu0 %v457
    %614 = vmatprep.subr.bf16.mxu0 0
    %615 = vmatpush1.bf16.msra.mxu0 %v458
    %616 = vmatprep.subr.bf16.mxu0 0
    %617 = vmatpush1.bf16.msra.mxu0 %v459
    %618 = vmatprep.subr.bf16.mxu0 0
    %619 = vmatpush1.bf16.msra.mxu0 %v460
    %620 = vmatprep.subr.bf16.mxu0 0
    %621 = vmatpush1.bf16.msra.mxu0 %v461
    %622 = vmatprep.subr.bf16.mxu0 0
    %623 = vmatpush1.bf16.msra.mxu0 %v462
    %624 = vmatprep.subr.bf16.mxu0 0
    %625 = vmatpush1.bf16.msra.mxu0 %v463
    %626 = vmatprep.mubr.bf16.mxu0 %v217
    %627 = vmatmul.mubr.bf16.gmra.mrb[0].mxu0 %v216
    %v628 = vpop.f32.mrb[0].mxu0
    %v629 = vadd.f32 %v588, %v628
    %v630 = vpop.f32.mrb[0].mxu0
    %v631 = vpop.f32.mrb[0].mxu0
    %v632 = vadd.f32 %v591, %v631
    %v633 = vpop.f32.mrb[0].mxu0
    %634 = vdwg.mxu0
    %v635 = vmax.f32 %v629, 0.0
    %v636 = vmax.f32 %v632, 0.0
    %v637 = vpack.c.bf16 %v636, %v635
    %v638 = vld [vmem:[#allocation9] sm:$0xf]
    %v639 = vld [vmem:[#allocation9 + $0x4] sm:$0xf]
    %v640 = vld [vmem:[#allocation9 + $0x8] sm:$0xf]
    %v641 = vld [vmem:[#allocation9 + $0xc] sm:$0xf]
    %v642 = vld [vmem:[#allocation9 + $0x10] sm:$0xf]
    %v643 = vld [vmem:[#allocation9 + $0x14] sm:$0xf]
    %v644 = vld [vmem:[#allocation9 + $0x18] sm:$0xf]
    %v645 = vld [vmem:[#allocation9 + $0x1c] sm:$0xf]
    %v646 = vld [vmem:[#allocation9 + $0x20] sm:$0xf]
    %v647 = vld [vmem:[#allocation9 + $0x24] sm:$0xf]
    %v648 = vld [vmem:[#allocation9 + $0x28] sm:$0xf]
    %v649 = vld [vmem:[#allocation9 + $0x2c] sm:$0xf]
    %v650 = vld [vmem:[#allocation9 + $0x30] sm:$0xf]
    %v651 = vld [vmem:[#allocation9 + $0x34] sm:$0xf]
    %v652 = vld [vmem:[#allocation9 + $0x38] sm:$0xf]
    %v653 = vld [vmem:[#allocation9 + $0x3c] sm:$0xf]
    %v654 = vld [vmem:[%s5] sm:$0x1]
    %v656 = vlaneseq
    %v657 = vshrl.u32 %v656, 7
    %v658 = vsub.s32 0, %v657
    %v659 = vrot.slane %v654, %v658
    %v677 = vunpack.c.l.b16 %v638
    %v678 = vunpack.c.l.b16 %v639
    %v679 = vunpack.c.l.b16 %v640
    %v680 = vunpack.c.l.b16 %v641
    %v681 = vunpack.c.l.b16 %v642
    %v682 = vunpack.c.l.b16 %v643
    %v683 = vunpack.c.l.b16 %v644
    %v684 = vunpack.c.l.b16 %v645
    %v685 = vunpack.c.l.b16 %v646
    %v686 = vunpack.c.l.b16 %v647
    %v687 = vunpack.c.l.b16 %v648
    %v688 = vunpack.c.l.b16 %v649
    %v689 = vunpack.c.l.b16 %v650
    %v690 = vunpack.c.l.b16 %v651
    %v691 = vunpack.c.l.b16 %v652
    %v692 = vunpack.c.l.b16 %v653
    %v693 = vpack.c.b16 %v678, %v677
    %v694 = vpack.c.b16 %v680, %v679
    %v695 = vpack.c.b16 %v682, %v681
    %v696 = vpack.c.b16 %v684, %v683
    %v697 = vpack.c.b16 %v686, %v685
    %v698 = vpack.c.b16 %v688, %v687
    %v699 = vpack.c.b16 %v690, %v689
    %v700 = vpack.c.b16 %v692, %v691
    %709 = vmatprep.subr.bf16.mxu0 0
    %710 = vmatpush1.bf16.msra.mxu0 %v693
    %711 = vmatprep.subr.bf16.mxu0 0
    %712 = vmatpush1.bf16.msra.mxu0 %v694
    %713 = vmatprep.subr.bf16.mxu0 0
    %714 = vmatpush1.bf16.msra.mxu0 %v695
    %715 = vmatprep.subr.bf16.mxu0 0
    %716 = vmatpush1.bf16.msra.mxu0 %v696
    %717 = vmatprep.subr.bf16.mxu0 0
    %718 = vmatpush1.bf16.msra.mxu0 %v697
    %719 = vmatprep.subr.bf16.mxu0 0
    %720 = vmatpush1.bf16.msra.mxu0 %v698
    %721 = vmatprep.subr.bf16.mxu0 0
    %722 = vmatpush1.bf16.msra.mxu0 %v699
    %723 = vmatprep.subr.bf16.mxu0 0
    %724 = vmatpush1.bf16.msra.mxu0 %v700
    %725 = vmatprep.subr.bf16.mxu0 0
    %726 = vmatpush1.bf16.msra.mxu0 0
    %727 = vmatprep.subr.bf16.mxu0 0
    %728 = vmatpush1.bf16.msra.mxu0 0
    %729 = vmatprep.subr.bf16.mxu0 0
    %730 = vmatpush1.bf16.msra.mxu0 0
    %731 = vmatprep.subr.bf16.mxu0 0
    %732 = vmatpush1.bf16.msra.mxu0 0
    %733 = vmatprep.subr.bf16.mxu0 0
    %734 = vmatpush1.bf16.msra.mxu0 0
    %735 = vmatprep.subr.bf16.mxu0 0
    %736 = vmatpush1.bf16.msra.mxu0 0
    %737 = vmatprep.subr.bf16.mxu0 0
    %738 = vmatpush1.bf16.msra.mxu0 0
    %739 = vmatprep.subr.bf16.mxu0 0
    %740 = vmatpush1.bf16.msra.mxu0 0
    %741 = vmatprep.mubr.bf16.mxu0 0
    %742 = vmatmul.mubr.bf16.gmra.mrb[0].mxu0 %v637
    %v743 = vpop.f32.mrb[0].mxu0
    %v744 = vadd.f32 %v659, %v743
    %v745 = vpop.f32.mrb[0].mxu0
    %v746 = vpop.f32.mrb[0].mxu0
    %v747 = vadd.f32 %v659, %v746
    %v748 = vpop.f32.mrb[0].mxu0
    %749 = vdwg.mxu0
    %v750 = vmax.f32 %v744, 0.0
    %v751 = vmax.f32 %v747, 0.0
    %v752 = vpack.c.bf16 %v751, %v750
    %v753 = vld [vmem:[#allocation10] sm:$0xf]
    %v754 = vld [vmem:[#allocation10 + $0x4] sm:$0xf]
    %v755 = vld [vmem:[#allocation10 + $0x8] sm:$0xf]
    %v756 = vld [vmem:[#allocation10 + $0xc] sm:$0xf]
    %v757 = vld [vmem:[#allocation10 + $0x10] sm:$0xf]
    %v758 = vld [vmem:[#allocation10 + $0x14] sm:$0xf]
    %v759 = vld [vmem:[#allocation10 + $0x18] sm:$0xf]
    %v760 = vld [vmem:[#allocation10 + $0x1c] sm:$0xf]
    %v761 = vld [vmem:[#allocation10 + $0x20] sm:$0xf]
    %v762 = vld [vmem:[#allocation10 + $0x24] sm:$0xf]
    %v763 = vld [vmem:[#allocation10 + $0x28] sm:$0xf]
    %v764 = vld [vmem:[#allocation10 + $0x2c] sm:$0xf]
    %v765 = vld [vmem:[#allocation10 + $0x30] sm:$0xf]
    %v766 = vld [vmem:[#allocation10 + $0x34] sm:$0xf]
    %v767 = vld [vmem:[#allocation10 + $0x38] sm:$0xf]
    %v768 = vld [vmem:[#allocation10 + $0x3c] sm:$0xf]
    %v769 = vld [vmem:[%s7] sm:$0x1]
    %v771 = vlaneseq
    %v772 = vshrl.u32 %v771, 7
    %v773 = vsub.s32 0, %v772
    %v774 = vrot.slane %v769, %v773
    %v792 = vunpack.c.l.b16 %v753
    %v793 = vunpack.c.l.b16 %v754
    %v794 = vunpack.c.l.b16 %v755
    %v795 = vunpack.c.l.b16 %v756
    %v796 = vunpack.c.l.b16 %v757
    %v797 = vunpack.c.l.b16 %v758
    %v798 = vunpack.c.l.b16 %v759
    %v799 = vunpack.c.l.b16 %v760
    %v800 = vunpack.c.l.b16 %v761
    %v801 = vunpack.c.l.b16 %v762
    %v802 = vunpack.c.l.b16 %v763
    %v803 = vunpack.c.l.b16 %v764
    %v804 = vunpack.c.l.b16 %v765
    %v805 = vunpack.c.l.b16 %v766
    %v806 = vunpack.c.l.b16 %v767
    %v807 = vunpack.c.l.b16 %v768
    %v808 = vpack.c.b16 %v793, %v792
    %v809 = vpack.c.b16 %v795, %v794
    %v810 = vpack.c.b16 %v797, %v796
    %v811 = vpack.c.b16 %v799, %v798
    %v812 = vpack.c.b16 %v801, %v800
    %v813 = vpack.c.b16 %v803, %v802
    %v814 = vpack.c.b16 %v805, %v804
    %v815 = vpack.c.b16 %v807, %v806
    %824 = vmatprep.subr.bf16.mxu0 0
    %825 = vmatpush1.bf16.msra.mxu0 %v808
    %826 = vmatprep.subr.bf16.mxu0 0
    %827 = vmatpush1.bf16.msra.mxu0 %v809
    %828 = vmatprep.subr.bf16.mxu0 0
    %829 = vmatpush1.bf16.msra.mxu0 %v810
    %830 = vmatprep.subr.bf16.mxu0 0
    %831 = vmatpush1.bf16.msra.mxu0 %v811
    %832 = vmatprep.subr.bf16.mxu0 0
    %833 = vmatpush1.bf16.msra.mxu0 %v812
    %834 = vmatprep.subr.bf16.mxu0 0
    %835 = vmatpush1.bf16.msra.mxu0 %v813
    %836 = vmatprep.subr.bf16.mxu0 0
    %837 = vmatpush1.bf16.msra.mxu0 %v814
    %838 = vmatprep.subr.bf16.mxu0 0
    %839 = vmatpush1.bf16.msra.mxu0 %v815
    %840 = vmatprep.subr.bf16.mxu0 0
    %841 = vmatpush1.bf16.msra.mxu0 0
    %842 = vmatprep.subr.bf16.mxu0 0
    %843 = vmatpush1.bf16.msra.mxu0 0
    %844 = vmatprep.subr.bf16.mxu0 0
    %845 = vmatpush1.bf16.msra.mxu0 0
    %846 = vmatprep.subr.bf16.mxu0 0
    %847 = vmatpush1.bf16.msra.mxu0 0
    %848 = vmatprep.subr.bf16.mxu0 0
    %849 = vmatpush1.bf16.msra.mxu0 0
    %850 = vmatprep.subr.bf16.mxu0 0
    %851 = vmatpush1.bf16.msra.mxu0 0
    %852 = vmatprep.subr.bf16.mxu0 0
    %853 = vmatpush1.bf16.msra.mxu0 0
    %854 = vmatprep.subr.bf16.mxu0 0
    %855 = vmatpush1.bf16.msra.mxu0 0
    %856 = vmatprep.mubr.bf16.mxu0 0
    %857 = vmatmul.mubr.bf16.gmra.mrb[0].mxu0 %v752
    %v858 = vpop.f32.mrb[0].mxu0
    %v859 = vadd.f32 %v774, %v858
    %v860 = vpop.f32.mrb[0].mxu0
    %v861 = vpop.f32.mrb[0].mxu0
    %v862 = vadd.f32 %v774, %v861
    %v863 = vpop.f32.mrb[0].mxu0
    %864 = vdwg.mxu0
    %s865 = sld [smem:[#allocation3]]
    %s866 = smul.u32 %s865, 4
    %s867 = sadd.s32 %s866, 4
    %v868 = vlaneseq
    %v869 = vand.u32 %v868, 127
    %v870 = vstv %s866
    %vm871 = vcmp.ge.s32.totalorder %v869, %v870
    %v872 = vstv %s867
    %vm873 = vcmp.lt.s32.totalorder %v869, %v872
    %vm874 = vmand %vm871, %vm873
    %v875 = vsel %vm874, 1, 0
    %vm876 = vcmp.eq.s32.totalorder %v875, 1
    %v877 = vsel %vm876, %v859, -1e+11
    %v878 = vsel %vm876, %v862, -1e+11
    %879 = vst [vmem:[#allocation12] sm:$0xff] %v877
    %880 = vst [vmem:[#allocation12 + $0x8] sm:$0xff] %v878
    // Predicated region
    $region46: #{tpu_custom_call.1} parent=1 // pred_check
      _
    $region47: #{tpu_custom_call.1} parent=1 // pred_check_branch
      %882 = sbr.rel (0) target = $region49
    $region48: #{tpu_custom_call.1} parent=1 // pred_region
      %s884 = ssub.s32 256, 256
      %885 = vsyncadd [#allocation6], %s884
      %s886 = sshll.u32 [#allocation12], 4
      %s887 = int_to_ptr.vmem [resolvable:$true] %s886
      %892 = dma.vmem_to_hbm [thread:$0]  %s887, 256, %s8, [#allocation6], 128, 128, 8
    $region49: #{tpu_custom_call.1} parent=1 // pred_fallthru
      _
    // Predicated region
    $region50: #{tpu_custom_call.1} parent=1 // pred_check
      _
    $region51: #{tpu_custom_call.1} parent=1 // pred_check_branch
      %894 = sbr.rel (0) target = $region53
    $region52: #{tpu_custom_call.1} parent=1 // pred_region
      %895 = dma.done [#allocation6], 256
    $region53: #{tpu_custom_call.1} parent=1 // pred_fallthru
      _
    %896 = vsyncpa [#allocation5], 1
    %897 = vsyncpa [#allocation8], 1
    %898 = vsyncpa [#allocation11], 1
    %899 = vsyncpa [#allocation6], 1

// kernel: tpu_custom_call.1
$region0: #{tpu_custom_call.1}
  #allocation0 [shape = 'u32[]', space=smem, size = 0x4, offset = 0x4, fixed_abs, tag = 'smem constant byte address 0x4 - core index']
  #allocation1 [shape = 'u32[144,128]{1,0:T(1,128)}', space=vmem, size = 0x12000, scoped, tag = 'internal scratch']
  #allocation2 [shape = 's32[1]{0}', space=sflag, size = 0x4, scoped, tag = 'scoped memory for tpu_custom_call.1']
  #allocation3 [shape = 's32[1]{0:T(128)S(6)}', space=smem, size = 0x200, scoped, tag = 'prefetched SMEM operand 0']
  %s0 = inlined_call_operand.<no memory space> [shape: s32[1], index: 0, kind: input, shape index: {}]
  %s1 = inlined_call_operand.hbm [shape: bf16[16,768], index: 1, kind: input, shape index: {}]
  %s2 = inlined_call_operand.hbm [shape: bf16[768,128], index: 2, kind: input, shape index: {}]
  %s3 = inlined_call_operand.vmem [shape: f32[1,128], index: 3, kind: input, shape index: {}]
  %s4 = inlined_call_operand.hbm [shape: bf16[128,128], index: 4, kind: input, shape index: {}]
  %s5 = inlined_call_operand.vmem [shape: f32[1,128], index: 5, kind: input, shape index: {}]
  %s6 = inlined_call_operand.hbm [shape: bf16[128,128], index: 6, kind: input, shape index: {}]
  %s7 = inlined_call_operand.vmem [shape: f32[1,128], index: 7, kind: input, shape index: {}]
  %s8 = inlined_call_operand.hbm [shape: f32[16,128], index: 8, kind: output, shape index: {}]
  %s9 = sld [smem:[#allocation0]]
  $region54: #{tpu_custom_call.1} parent=0
    _
  %s11 = ssub.s32 1, %s9
  %s12 = scalar_select 0, %s11, %s9
  %13 = sst [smem:[#allocation3]] %s0
  $region1: #{tpu_custom_call.1} parent=0
    #allocation4 [shape = 'u8[24576]{0}', space=vmem, size = 0x6000, scoped, tag = 'input window, operand 1, single buffered']
    #allocation5 [shape = 's32[1]{0}', space=sflag, size = 0x4, scoped, tag = 'scoped memory for tpu_custom_call.1']
    #allocation6 [shape = 's32[1]{0}', space=sflag, size = 0x4, scoped, tag = 'scoped memory for tpu_custom_call.1']
    #allocation7 [shape = 'u8[196608]{0}', space=vmem, size = 0x30000, scoped, tag = 'input window, operand 2, single buffered']
    #allocation8 [shape = 's32[1]{0}', space=sflag, size = 0x4, scoped, tag = 'scoped memory for tpu_custom_call.1']
    #allocation9 [shape = 'u8[32768]{0}', space=vmem, size = 0x8000, scoped, tag = 'input window, operand 4, single buffered']
    #allocation10 [shape = 'u8[32768]{0}', space=vmem, size = 0x8000, scoped, tag = 'input window, operand 6, single buffered']
    #allocation11 [shape = 's32[1]{0}', space=sflag, size = 0x4, scoped, tag = 'scoped memory for tpu_custom_call.1']
    #allocation12 [shape = 'u8[8192]{0}', space=vmem, size = 0x2000, scoped, tag = 'output window, operand 0, single buffered']
    %14 = vsyncpa [#allocation5], 0
    %15 = vsyncpa [#allocation8], 0
    %16 = vsyncpa [#allocation11], 0
    %17 = vsyncpa [#allocation6], 0
    // Predicated region
    $region2: #{tpu_custom_call.1} parent=1 // pred_check
      _
    $region3: #{tpu_custom_call.1} parent=1 // pred_check_branch
      %19 = sbr.rel (0) target = $region5
    $region4: #{tpu_custom_call.1} parent=1 // pred_region
      %s21 = ssub.s32 768, 768
      %22 = vsyncadd [#allocation5], %s21
      %s23 = sshll.u32 [#allocation4], 4
      %s24 = int_to_ptr.vmem [resolvable:$true] %s23
      %29 = dma.hbm_to_vmem [thread:$0]  %s1, 768, %s24, [#allocation5], 384, 384, 24
    $region5: #{tpu_custom_call.1} parent=1 // pred_fallthru
      _
    // Predicated region
    $region6: #{tpu_custom_call.1} parent=1 // pred_check
      _
    $region7: #{tpu_custom_call.1} parent=1 // pred_check_branch
      %31 = sbr.rel (0) target = $region9
    $region8: #{tpu_custom_call.1} parent=1 // pred_region
      %s33 = ssub.s32 6144, 6144
      %34 = vsyncadd [#allocation8], %s33
      %s35 = sshll.u32 [#allocation7], 4
      %s36 = int_to_ptr.vmem [resolvable:$true] %s35
      %41 = dma.hbm_to_vmem [thread:$0]  %s2, 6144, %s36, [#allocation8], 64, 64, 4
    $region9: #{tpu_custom_call.1} parent=1 // pred_fallthru
      _
    // Predicated region
    $region10: #{tpu_custom_call.1} parent=1 // pred_check
      _
    $region11: #{tpu_custom_call.1} parent=1 // pred_check_branch
      %43 = sbr.rel (0) target = $region13
    $region12: #{tpu_custom_call.1} parent=1 // pred_region
      _
    $region13: #{tpu_custom_call.1} parent=1 // pred_fallthru
      _
    // Predicated region
    $region14: #{tpu_custom_call.1} parent=1 // pred_check
      _
    $region15: #{tpu_custom_call.1} parent=1 // pred_check_branch
      %45 = sbr.rel (0) target = $region17
    $region16: #{tpu_custom_call.1} parent=1 // pred_region
      %s47 = ssub.s32 1024, 1024
      %48 = vsyncadd [#allocation8], %s47
      %s49 = sshll.u32 [#allocation9], 4
      %s50 = int_to_ptr.vmem [resolvable:$true] %s49
      %55 = dma.hbm_to_vmem [thread:$0]  %s4, 1024, %s50, [#allocation8], 64, 64, 4
    $region17: #{tpu_custom_call.1} parent=1 // pred_fallthru
      _
    // Predicated region
    $region18: #{tpu_custom_call.1} parent=1 // pred_check
      _
    $region19: #{tpu_custom_call.1} parent=1 // pred_check_branch
      %57 = sbr.rel (0) target = $region21
    $region20: #{tpu_custom_call.1} parent=1 // pred_region
      _
    $region21: #{tpu_custom_call.1} parent=1 // pred_fallthru
      _
    // Predicated region
    $region22: #{tpu_custom_call.1} parent=1 // pred_check
      _
    $region23: #{tpu_custom_call.1} parent=1 // pred_check_branch
      %59 = sbr.rel (0) target = $region25
    $region24: #{tpu_custom_call.1} parent=1 // pred_region
      %s61 = ssub.s32 1024, 1024
      %62 = vsyncadd [#allocation11], %s61
      %s63 = sshll.u32 [#allocation10], 4
      %s64 = int_to_ptr.vmem [resolvable:$true] %s63
      %69 = dma.hbm_to_vmem [thread:$0]  %s6, 1024, %s64, [#allocation11], 64, 64, 4
    $region25: #{tpu_custom_call.1} parent=1 // pred_fallthru
      _
    // Predicated region
    $region26: #{tpu_custom_call.1} parent=1 // pred_check
      _
    $region27: #{tpu_custom_call.1} parent=1 // pred_check_branch
      %71 = sbr.rel (0) target = $region29
    $region28: #{tpu_custom_call.1} parent=1 // pred_region
      _
    $region29: #{tpu_custom_call.1} parent=1 // pred_fallthru
      _
    // Predicated region
    $region30: #{tpu_custom_call.1} parent=1 // pred_check
      _
    $region31: #{tpu_custom_call.1} parent=1 // pred_check_branch
      %73 = sbr.rel (0) target = $region33
    $region32: #{tpu_custom_call.1} parent=1 // pred_region
      %74 = dma.done [#allocation5], 768
    $region33: #{tpu_custom_call.1} parent=1 // pred_fallthru
      _
    // Predicated region
    $region34: #{tpu_custom_call.1} parent=1 // pred_check
      _
    $region35: #{tpu_custom_call.1} parent=1 // pred_check_branch
      %76 = sbr.rel (0) target = $region37
    $region36: #{tpu_custom_call.1} parent=1 // pred_region
      %77 = dma.done [#allocation8], 6144
    $region37: #{tpu_custom_call.1} parent=1 // pred_fallthru
      _
    // Predicated region
    $region38: #{tpu_custom_call.1} parent=1 // pred_check
      _
    $region39: #{tpu_custom_call.1} parent=1 // pred_check_branch
      %79 = sbr.rel (0) target = $region41
    $region40: #{tpu_custom_call.1} parent=1 // pred_region
      %80 = dma.done [#allocation8], 1024
    $region41: #{tpu_custom_call.1} parent=1 // pred_fallthru
      _
    // Predicated region
    $region42: #{tpu_custom_call.1} parent=1 // pred_check
      _
    $region43: #{tpu_custom_call.1} parent=1 // pred_check_branch
      %82 = sbr.rel (0) target = $region45
    $region44: #{tpu_custom_call.1} parent=1 // pred_region
      %83 = dma.done [#allocation11], 1024
    $region45: #{tpu_custom_call.1} parent=1 // pred_fallthru
      _
    %v85 = vld [vmem:[#allocation4] sm:$0xff]
    %v86 = vld [vmem:[#allocation4 + $0x8] sm:$0xff]
    %v87 = vld [vmem:[#allocation4 + $0x10] sm:$0xff]
    %v88 = vld [vmem:[#allocation4 + $0x18] sm:$0xff]
    %v89 = vld [vmem:[#allocation4 + $0x20] sm:$0xff]
    %v90 = vld [vmem:[#allocation4 + $0x28] sm:$0xff]
    %v91 = vld [vmem:[#allocation7] sm:$0xf]
    %v92 = vld [vmem:[#allocation7 + $0x4] sm:$0xf]
    %v93 = vld [vmem:[#allocation7 + $0x8] sm:$0xf]
    %v94 = vld [vmem:[#allocation7 + $0xc] sm:$0xf]
    %v95 = vld [vmem:[#allocation7 + $0x10] sm:$0xf]
    %v96 = vld [vmem:[#allocation7 + $0x14] sm:$0xf]
    %v97 = vld [vmem:[#allocation7 + $0x18] sm:$0xf]
    %v98 = vld [vmem:[#allocation7 + $0x1c] sm:$0xf]
    %v99 = vld [vmem:[#allocation7 + $0x20] sm:$0xf]
    %v100 = vld [vmem:[#allocation7 + $0x24] sm:$0xf]
    %v101 = vld [vmem:[#allocation7 + $0x28] sm:$0xf]
    %v102 = vld [vmem:[#allocation7 + $0x2c] sm:$0xf]
    %v103 = vld [vmem:[#allocation7 + $0x30] sm:$0xf]
    %v104 = vld [vmem:[#allocation7 + $0x34] sm:$0xf]
    %v105 = vld [vmem:[#allocation7 + $0x38] sm:$0xf]
    %v106 = vld [vmem:[#allocation7 + $0x3c] sm:$0xf]
    %v107 = vld [vmem:[#allocation7 + $0x40] sm:$0xf]
    %v108 = vld [vmem:[#allocation7 + $0x44] sm:$0xf]
    %v109 = vld [vmem:[#allocation7 + $0x48] sm:$0xf]
    %v110 = vld [vmem:[#allocation7 + $0x4c] sm:$0xf]
    %v111 = vld [vmem:[#allocation7 + $0x50] sm:$0xf]
    %v112 = vld [vmem:[#allocation7 + $0x54] sm:$0xf]
    %v113 = vld [vmem:[#allocation7 + $0x58] sm:$0xf]
    %v114 = vld [vmem:[#allocation7 + $0x5c] sm:$0xf]
    %v115 = vld [vmem:[#allocation7 + $0x60] sm:$0xf]
    %v116 = vld [vmem:[#allocation7 + $0x64] sm:$0xf]
    %v117 = vld [vmem:[#allocation7 + $0x68] sm:$0xf]
    %v118 = vld [vmem:[#allocation7 + $0x6c] sm:$0xf]
    %v119 = vld [vmem:[#allocation7 + $0x70] sm:$0xf]
    %v120 = vld [vmem:[#allocation7 + $0x74] sm:$0xf]
    %v121 = vld [vmem:[#allocation7 + $0x78] sm:$0xf]
    %v122 = vld [vmem:[#allocation7 + $0x7c] sm:$0xf]
    %v123 = vld [vmem:[#allocation7 + $0x80] sm:$0xf]
    %v124 = vld [vmem:[#allocation7 + $0x84] sm:$0xf]
    %v125 = vld [vmem:[#allocation7 + $0x88] sm:$0xf]
    %v126 = vld [vmem:[#allocation7 + $0x8c] sm:$0xf]
    %v127 = vld [vmem:[#allocation7 + $0x90] sm:$0xf]
    %v128 = vld [vmem:[#allocation7 + $0x94] sm:$0xf]
    %v129 = vld [vmem:[#allocation7 + $0x98] sm:$0xf]
    %v130 = vld [vmem:[#allocation7 + $0x9c] sm:$0xf]
    %v131 = vld [vmem:[#allocation7 + $0xa0] sm:$0xf]
    %v132 = vld [vmem:[#allocation7 + $0xa4] sm:$0xf]
    %v133 = vld [vmem:[#allocation7 + $0xa8] sm:$0xf]
    %v134 = vld [vmem:[#allocation7 + $0xac] sm:$0xf]
    %v135 = vld [vmem:[#allocation7 + $0xb0] sm:$0xf]
    %v136 = vld [vmem:[#allocation7 + $0xb4] sm:$0xf]
    %v137 = vld [vmem:[#allocation7 + $0xb8] sm:$0xf]
    %v138 = vld [vmem:[#allocation7 + $0xbc] sm:$0xf]
    %v139 = vld [vmem:[#allocation7 + $0xc0] sm:$0xf]
    %v140 = vld [vmem:[#allocation7 + $0xc4] sm:$0xf]
    %v141 = vld [vmem:[#allocation7 + $0xc8] sm:$0xf]
    %v142 = vld [vmem:[#allocation7 + $0xcc] sm:$0xf]
    %v143 = vld [vmem:[#allocation7 + $0xd0] sm:$0xf]
    %v144 = vld [vmem:[#allocation7 + $0xd4] sm:$0xf]
    %v145 = vld [vmem:[#allocation7 + $0xd8] sm:$0xf]
    %v146 = vld [vmem:[#allocation7 + $0xdc] sm:$0xf]
    %v147 = vld [vmem:[#allocation7 + $0xe0] sm:$0xf]
    %v148 = vld [vmem:[#allocation7 + $0xe4] sm:$0xf]
    %v149 = vld [vmem:[#allocation7 + $0xe8] sm:$0xf]
    %v150 = vld [vmem:[#allocation7 + $0xec] sm:$0xf]
    %v151 = vld [vmem:[#allocation7 + $0xf0] sm:$0xf]
    %v152 = vld [vmem:[#allocation7 + $0xf4] sm:$0xf]
    %v153 = vld [vmem:[#allocation7 + $0xf8] sm:$0xf]
    %v154 = vld [vmem:[#allocation7 + $0xfc] sm:$0xf]
    %v155 = vld [vmem:[#allocation7 + $0x100] sm:$0xf]
    %v156 = vld [vmem:[#allocation7 + $0x104] sm:$0xf]
    %v157 = vld [vmem:[#allocation7 + $0x108] sm:$0xf]
    %v158 = vld [vmem:[#allocation7 + $0x10c] sm:$0xf]
    %v159 = vld [vmem:[#allocation7 + $0x110] sm:$0xf]
    %v160 = vld [vmem:[#allocation7 + $0x114] sm:$0xf]
    %v161 = vld [vmem:[#allocation7 + $0x118] sm:$0xf]
    %v162 = vld [vmem:[#allocation7 + $0x11c] sm:$0xf]
    %v163 = vld [vmem:[#allocation7 + $0x120] sm:$0xf]
    %v164 = vld [vmem:[#allocation7 + $0x124] sm:$0xf]
    %v165 = vld [vmem:[#allocation7 + $0x128] sm:$0xf]
    %v166 = vld [vmem:[#allocation7 + $0x12c] sm:$0xf]
    %v167 = vld [vmem:[#allocation7 + $0x130] sm:$0xf]
    %v168 = vld [vmem:[#allocation7 + $0x134] sm:$0xf]
    %v169 = vld [vmem:[#allocation7 + $0x138] sm:$0xf]
    %v170 = vld [vmem:[#allocation7 + $0x13c] sm:$0xf]
    %v171 = vld [vmem:[#allocation7 + $0x140] sm:$0xf]
    %v172 = vld [vmem:[#allocation7 + $0x144] sm:$0xf]
    %v173 = vld [vmem:[#allocation7 + $0x148] sm:$0xf]
    %v174 = vld [vmem:[#allocation7 + $0x14c] sm:$0xf]
    %v175 = vld [vmem:[#allocation7 + $0x150] sm:$0xf]
    %v176 = vld [vmem:[#allocation7 + $0x154] sm:$0xf]
    %v177 = vld [vmem:[#allocation7 + $0x158] sm:$0xf]
    %v178 = vld [vmem:[#allocation7 + $0x15c] sm:$0xf]
    %v179 = vld [vmem:[#allocation7 + $0x160] sm:$0xf]
    %v180 = vld [vmem:[#allocation7 + $0x164] sm:$0xf]
    %v181 = vld [vmem:[#allocation7 + $0x168] sm:$0xf]
    %v182 = vld [vmem:[#allocation7 + $0x16c] sm:$0xf]
    %v183 = vld [vmem:[#allocation7 + $0x170] sm:$0xf]
    %v184 = vld [vmem:[#allocation7 + $0x174] sm:$0xf]
    %v185 = vld [vmem:[#allocation7 + $0x178] sm:$0xf]
    %v186 = vld [vmem:[#allocation7 + $0x17c] sm:$0xf]
    %v187 = vld [vmem:[%s3] sm:$0x1]
    %v189 = vlaneseq
    %v190 = vshrl.u32 %v189, 7
    %v191 = vsub.s32 0, %v190
    %v192 = vrot.slane %v187, %v191
    %v200 = vunpack.c.l.b16 %v85
    %v201 = vunpack.c.h.b16 %v85
    %v202 = vunpack.c.l.b16 %v86
    %v203 = vunpack.c.h.b16 %v86
    %v204 = vunpack.c.l.b16 %v87
    %v205 = vunpack.c.h.b16 %v87
    %v206 = vunpack.c.l.b16 %v88
    %v207 = vunpack.c.h.b16 %v88
    %v208 = vunpack.c.l.b16 %v89
    %v209 = vunpack.c.h.b16 %v89
    %v210 = vunpack.c.l.b16 %v90
    %v211 = vunpack.c.h.b16 %v90
    %v212 = vpack.c.b16 %v206, %v200
    %v213 = vpack.c.b16 %v207, %v201
    %v214 = vpack.c.b16 %v208, %v202
    %v215 = vpack.c.b16 %v209, %v203
    %v216 = vpack.c.b16 %v210, %v204
    %v217 = vpack.c.b16 %v211, %v205
    %v320 = vunpack.c.l.b16 %v91
    %v321 = vunpack.c.l.b16 %v92
    %v322 = vunpack.c.l.b16 %v93
    %v323 = vunpack.c.l.b16 %v94
    %v324 = vunpack.c.l.b16 %v95
    %v325 = vunpack.c.l.b16 %v96
    %v326 = vunpack.c.l.b16 %v97
    %v327 = vunpack.c.l.b16 %v98
    %v328 = vunpack.c.l.b16 %v99
    %v329 = vunpack.c.l.b16 %v100
    %v330 = vunpack.c.l.b16 %v101
    %v331 = vunpack.c.l.b16 %v102
    %v332 = vunpack.c.l.b16 %v103
    %v333 = vunpack.c.l.b16 %v104
    %v334 = vunpack.c.l.b16 %v105
    %v335 = vunpack.c.l.b16 %v106
    %v336 = vunpack.c.l.b16 %v107
    %v337 = vunpack.c.l.b16 %v108
    %v338 = vunpack.c.l.b16 %v109
    %v339 = vunpack.c.l.b16 %v110
    %v340 = vunpack.c.l.b16 %v111
    %v341 = vunpack.c.l.b16 %v112
    %v342 = vunpack.c.l.b16 %v113
    %v343 = vunpack.c.l.b16 %v114
    %v344 = vunpack.c.l.b16 %v115
    %v345 = vunpack.c.l.b16 %v116
    %v346 = vunpack.c.l.b16 %v117
    %v347 = vunpack.c.l.b16 %v118
    %v348 = vunpack.c.l.b16 %v119
    %v349 = vunpack.c.l.b16 %v120
    %v350 = vunpack.c.l.b16 %v121
    %v351 = vunpack.c.l.b16 %v122
    %v352 = vunpack.c.l.b16 %v123
    %v353 = vunpack.c.l.b16 %v124
    %v354 = vunpack.c.l.b16 %v125
    %v355 = vunpack.c.l.b16 %v126
    %v356 = vunpack.c.l.b16 %v127
    %v357 = vunpack.c.l.b16 %v128
    %v358 = vunpack.c.l.b16 %v129
    %v359 = vunpack.c.l.b16 %v130
    %v360 = vunpack.c.l.b16 %v131
    %v361 = vunpack.c.l.b16 %v132
    %v362 = vunpack.c.l.b16 %v133
    %v363 = vunpack.c.l.b16 %v134
    %v364 = vunpack.c.l.b16 %v135
    %v365 = vunpack.c.l.b16 %v136
    %v366 = vunpack.c.l.b16 %v137
    %v367 = vunpack.c.l.b16 %v138
    %v368 = vunpack.c.l.b16 %v139
    %v369 = vunpack.c.l.b16 %v140
    %v370 = vunpack.c.l.b16 %v141
    %v371 = vunpack.c.l.b16 %v142
    %v372 = vunpack.c.l.b16 %v143
    %v373 = vunpack.c.l.b16 %v144
    %v374 = vunpack.c.l.b16 %v145
    %v375 = vunpack.c.l.b16 %v146
    %v376 = vunpack.c.l.b16 %v147
    %v377 = vunpack.c.l.b16 %v148
    %v378 = vunpack.c.l.b16 %v149
    %v379 = vunpack.c.l.b16 %v150
    %v380 = vunpack.c.l.b16 %v151
    %v381 = vunpack.c.l.b16 %v152
    %v382 = vunpack.c.l.b16 %v153
    %v383 = vunpack.c.l.b16 %v154
    %v384 = vunpack.c.l.b16 %v155
    %v385 = vunpack.c.l.b16 %v156
    %v386 = vunpack.c.l.b16 %v157
    %v387 = vunpack.c.l.b16 %v158
    %v388 = vunpack.c.l.b16 %v159
    %v389 = vunpack.c.l.b16 %v160
    %v390 = vunpack.c.l.b16 %v161
    %v391 = vunpack.c.l.b16 %v162
    %v392 = vunpack.c.l.b16 %v163
    %v393 = vunpack.c.l.b16 %v164
    %v394 = vunpack.c.l.b16 %v165
    %v395 = vunpack.c.l.b16 %v166
    %v396 = vunpack.c.l.b16 %v167
    %v397 = vunpack.c.l.b16 %v168
    %v398 = vunpack.c.l.b16 %v169
    %v399 = vunpack.c.l.b16 %v170
    %v400 = vunpack.c.l.b16 %v171
    %v401 = vunpack.c.l.b16 %v172
    %v402 = vunpack.c.l.b16 %v173
    %v403 = vunpack.c.l.b16 %v174
    %v404 = vunpack.c.l.b16 %v175
    %v405 = vunpack.c.l.b16 %v176
    %v406 = vunpack.c.l.b16 %v177
    %v407 = vunpack.c.l.b16 %v178
    %v408 = vunpack.c.l.b16 %v179
    %v409 = vunpack.c.l.b16 %v180
    %v410 = vunpack.c.l.b16 %v181
    %v411 = vunpack.c.l.b16 %v182
    %v412 = vunpack.c.l.b16 %v183
    %v413 = vunpack.c.l.b16 %v184
    %v414 = vunpack.c.l.b16 %v185
    %v415 = vunpack.c.l.b16 %v186
    %v416 = vpack.c.b16 %v321, %v320
    %v417 = vpack.c.b16 %v323, %v322
    %v418 = vpack.c.b16 %v325, %v324
    %v419 = vpack.c.b16 %v327, %v326
    %v420 = vpack.c.b16 %v329, %v328
    %v421 = vpack.c.b16 %v331, %v330
    %v422 = vpack.c.b16 %v333, %v332
    %v423 = vpack.c.b16 %v335, %v334
    %v424 = vpack.c.b16 %v337, %v336
    %v425 = vpack.c.b16 %v339, %v338
    %v426 = vpack.c.b16 %v341, %v340
    %v427 = vpack.c.b16 %v343, %v342
    %v428 = vpack.c.b16 %v345, %v344
    %v429 = vpack.c.b16 %v347, %v346
    %v430 = vpack.c.b16 %v349, %v348
    %v431 = vpack.c.b16 %v351, %v350
    %v432 = vpack.c.b16 %v353, %v352
    %v433 = vpack.c.b16 %v355, %v354
    %v434 = vpack.c.b16 %v357, %v356
    %v435 = vpack.c.b16 %v359, %v358
    %v436 = vpack.c.b16 %v361, %v360
    %v437 = vpack.c.b16 %v363, %v362
    %v438 = vpack.c.b16 %v365, %v364
    %v439 = vpack.c.b16 %v367, %v366
    %v440 = vpack.c.b16 %v369, %v368
    %v441 = vpack.c.b16 %v371, %v370
    %v442 = vpack.c.b16 %v373, %v372
    %v443 = vpack.c.b16 %v375, %v374
    %v444 = vpack.c.b16 %v377, %v376
    %v445 = vpack.c.b16 %v379, %v378
    %v446 = vpack.c.b16 %v381, %v380
    %v447 = vpack.c.b16 %v383, %v382
    %v448 = vpack.c.b16 %v385, %v384
    %v449 = vpack.c.b16 %v387, %v386
    %v450 = vpack.c.b16 %v389, %v388
    %v451 = vpack.c.b16 %v391, %v390
    %v452 = vpack.c.b16 %v393, %v392
    %v453 = vpack.c.b16 %v395, %v394
    %v454 = vpack.c.b16 %v397, %v396
    %v455 = vpack.c.b16 %v399, %v398
    %v456 = vpack.c.b16 %v401, %v400
    %v457 = vpack.c.b16 %v403, %v402
    %v458 = vpack.c.b16 %v405, %v404
    %v459 = vpack.c.b16 %v407, %v406
    %v460 = vpack.c.b16 %v409, %v408
    %v461 = vpack.c.b16 %v411, %v410
    %v462 = vpack.c.b16 %v413, %v412
    %v463 = vpack.c.b16 %v415, %v414
    %512 = vmatprep.subr.bf16.mxu0 0
    %513 = vmatpush1.bf16.msra.mxu0 %v416
    %514 = vmatprep.subr.bf16.mxu0 0
    %515 = vmatpush1.bf16.msra.mxu0 %v417
    %516 = vmatprep.subr.bf16.mxu0 0
    %517 = vmatpush1.bf16.msra.mxu0 %v418
    %518 = vmatprep.subr.bf16.mxu0 0
    %519 = vmatpush1.bf16.msra.mxu0 %v419
    %520 = vmatprep.subr.bf16.mxu0 0
    %521 = vmatpush1.bf16.msra.mxu0 %v420
    %522 = vmatprep.subr.bf16.mxu0 0
    %523 = vmatpush1.bf16.msra.mxu0 %v421
    %524 = vmatprep.subr.bf16.mxu0 0
    %525 = vmatpush1.bf16.msra.mxu0 %v422
    %526 = vmatprep.subr.bf16.mxu0 0
    %527 = vmatpush1.bf16.msra.mxu0 %v423
    %528 = vmatprep.subr.bf16.mxu0 0
    %529 = vmatpush1.bf16.msra.mxu0 %v424
    %530 = vmatprep.subr.bf16.mxu0 0
    %531 = vmatpush1.bf16.msra.mxu0 %v425
    %532 = vmatprep.subr.bf16.mxu0 0
    %533 = vmatpush1.bf16.msra.mxu0 %v426
    %534 = vmatprep.subr.bf16.mxu0 0
    %535 = vmatpush1.bf16.msra.mxu0 %v427
    %536 = vmatprep.subr.bf16.mxu0 0
    %537 = vmatpush1.bf16.msra.mxu0 %v428
    %538 = vmatprep.subr.bf16.mxu0 0
    %539 = vmatpush1.bf16.msra.mxu0 %v429
    %540 = vmatprep.subr.bf16.mxu0 0
    %541 = vmatpush1.bf16.msra.mxu0 %v430
    %542 = vmatprep.subr.bf16.mxu0 0
    %543 = vmatpush1.bf16.msra.mxu0 %v431
    %544 = vmatprep.mubr.bf16.mxu0 %v213
    %545 = vmatmul.mubr.bf16.gmra.mrb[0].mxu0 %v212
    %v546 = vpop.f32.mrb[0].mxu0
    %v547 = vadd.f32 %v192, %v546
    %v548 = vpop.f32.mrb[0].mxu0
    %v549 = vpop.f32.mrb[0].mxu0
    %v550 = vadd.f32 %v192, %v549
    %v551 = vpop.f32.mrb[0].mxu0
    %552 = vdwg.mxu0
    %553 = vmatprep.subr.bf16.mxu0 0
    %554 = vmatpush1.bf16.msra.mxu0 %v432
    %555 = vmatprep.subr.bf16.mxu0 0
    %556 = vmatpush1.bf16.msra.mxu0 %v433
    %557 = vmatprep.subr.bf16.mxu0 0
    %558 = vmatpush1.bf16.msra.mxu0 %v434
    %559 = vmatprep.subr.bf16.mxu0 0
    %560 = vmatpush1.bf16.msra.mxu0 %v435
    %561 = vmatprep.subr.bf16.mxu0 0
    %562 = vmatpush1.bf16.msra.mxu0 %v436
    %563 = vmatprep.subr.bf16.mxu0 0
    %564 = vmatpush1.bf16.msra.mxu0 %v437
    %565 = vmatprep.subr.bf16.mxu0 0
    %566 = vmatpush1.bf16.msra.mxu0 %v438
    %567 = vmatprep.subr.bf16.mxu0 0
    %568 = vmatpush1.bf16.msra.mxu0 %v439
    %569 = vmatprep.subr.bf16.mxu0 0
    %570 = vmatpush1.bf16.msra.mxu0 %v440
    %571 = vmatprep.subr.bf16.mxu0 0
    %572 = vmatpush1.bf16.msra.mxu0 %v441
    %573 = vmatprep.subr.bf16.mxu0 0
    %574 = vmatpush1.bf16.msra.mxu0 %v442
    %575 = vmatprep.subr.bf16.mxu0 0
    %576 = vmatpush1.bf16.msra.mxu0 %v443
    %577 = vmatprep.subr.bf16.mxu0 0
    %578 = vmatpush1.bf16.msra.mxu0 %v444
    %579 = vmatprep.subr.bf16.mxu0 0
    %580 = vmatpush1.bf16.msra.mxu0 %v445
    %581 = vmatprep.subr.bf16.mxu0 0
    %582 = vmatpush1.bf16.msra.mxu0 %v446
    %583 = vmatprep.subr.bf16.mxu0 0
    %584 = vmatpush1.bf16.msra.mxu0 %v447
    %585 = vmatprep.mubr.bf16.mxu0 %v215
    %586 = vmatmul.mubr.bf16.gmra.mrb[0].mxu0 %v214
    %v587 = vpop.f32.mrb[0].mxu0
    %v588 = vadd.f32 %v547, %v587
    %v589 = vpop.f32.mrb[0].mxu0
    %v590 = vpop.f32.mrb[0].mxu0
    %v591 = vadd.f32 %v550, %v590
    %v592 = vpop.f32.mrb[0].mxu0
    %593 = vdwg.mxu0
    %594 = vmatprep.subr.bf16.mxu0 0
    %595 = vmatpush1.bf16.msra.mxu0 %v448
    %596 = vmatprep.subr.bf16.mxu0 0
    %597 = vmatpush1.bf16.msra.mxu0 %v449
    %598 = vmatprep.subr.bf16.mxu0 0
    %599 = vmatpush1.bf16.msra.mxu0 %v450
    %600 = vmatprep.subr.bf16.mxu0 0
    %601 = vmatpush1.bf16.msra.mxu0 %v451
    %602 = vmatprep.subr.bf16.mxu0 0
    %603 = vmatpush1.bf16.msra.mxu0 %v452
    %604 = vmatprep.subr.bf16.mxu0 0
    %605 = vmatpush1.bf16.msra.mxu0 %v453
    %606 = vmatprep.subr.bf16.mxu0 0
    %607 = vmatpush1.bf16.msra.mxu0 %v454
    %608 = vmatprep.subr.bf16.mxu0 0
    %609 = vmatpush1.bf16.msra.mxu0 %v455
    %610 = vmatprep.subr.bf16.mxu0 0
    %611 = vmatpush1.bf16.msra.mxu0 %v456
    %612 = vmatprep.subr.bf16.mxu0 0
    %613 = vmatpush1.bf16.msra.mxu0 %v457
    %614 = vmatprep.subr.bf16.mxu0 0
    %615 = vmatpush1.bf16.msra.mxu0 %v458
    %616 = vmatprep.subr.bf16.mxu0 0
    %617 = vmatpush1.bf16.msra.mxu0 %v459
    %618 = vmatprep.subr.bf16.mxu0 0
    %619 = vmatpush1.bf16.msra.mxu0 %v460
    %620 = vmatprep.subr.bf16.mxu0 0
    %621 = vmatpush1.bf16.msra.mxu0 %v461
    %622 = vmatprep.subr.bf16.mxu0 0
    %623 = vmatpush1.bf16.msra.mxu0 %v462
    %624 = vmatprep.subr.bf16.mxu0 0
    %625 = vmatpush1.bf16.msra.mxu0 %v463
    %626 = vmatprep.mubr.bf16.mxu0 %v217
    %627 = vmatmul.mubr.bf16.gmra.mrb[0].mxu0 %v216
    %v628 = vpop.f32.mrb[0].mxu0
    %v629 = vadd.f32 %v588, %v628
    %v630 = vpop.f32.mrb[0].mxu0
    %v631 = vpop.f32.mrb[0].mxu0
    %v632 = vadd.f32 %v591, %v631
    %v633 = vpop.f32.mrb[0].mxu0
    %634 = vdwg.mxu0
    %v635 = vmax.f32 %v629, 0.0
    %v636 = vmax.f32 %v632, 0.0
    %v637 = vpack.c.bf16 %v636, %v635
    %v638 = vld [vmem:[#allocation9] sm:$0xf]
    %v639 = vld [vmem:[#allocation9 + $0x4] sm:$0xf]
    %v640 = vld [vmem:[#allocation9 + $0x8] sm:$0xf]
    %v641 = vld [vmem:[#allocation9 + $0xc] sm:$0xf]
    %v642 = vld [vmem:[#allocation9 + $0x10] sm:$0xf]
    %v643 = vld [vmem:[#allocation9 + $0x14] sm:$0xf]
    %v644 = vld [vmem:[#allocation9 + $0x18] sm:$0xf]
    %v645 = vld [vmem:[#allocation9 + $0x1c] sm:$0xf]
    %v646 = vld [vmem:[#allocation9 + $0x20] sm:$0xf]
    %v647 = vld [vmem:[#allocation9 + $0x24] sm:$0xf]
    %v648 = vld [vmem:[#allocation9 + $0x28] sm:$0xf]
    %v649 = vld [vmem:[#allocation9 + $0x2c] sm:$0xf]
    %v650 = vld [vmem:[#allocation9 + $0x30] sm:$0xf]
    %v651 = vld [vmem:[#allocation9 + $0x34] sm:$0xf]
    %v652 = vld [vmem:[#allocation9 + $0x38] sm:$0xf]
    %v653 = vld [vmem:[#allocation9 + $0x3c] sm:$0xf]
    %v654 = vld [vmem:[%s5] sm:$0x1]
    %v656 = vlaneseq
    %v657 = vshrl.u32 %v656, 7
    %v658 = vsub.s32 0, %v657
    %v659 = vrot.slane %v654, %v658
    %v677 = vunpack.c.l.b16 %v638
    %v678 = vunpack.c.l.b16 %v639
    %v679 = vunpack.c.l.b16 %v640
    %v680 = vunpack.c.l.b16 %v641
    %v681 = vunpack.c.l.b16 %v642
    %v682 = vunpack.c.l.b16 %v643
    %v683 = vunpack.c.l.b16 %v644
    %v684 = vunpack.c.l.b16 %v645
    %v685 = vunpack.c.l.b16 %v646
    %v686 = vunpack.c.l.b16 %v647
    %v687 = vunpack.c.l.b16 %v648
    %v688 = vunpack.c.l.b16 %v649
    %v689 = vunpack.c.l.b16 %v650
    %v690 = vunpack.c.l.b16 %v651
    %v691 = vunpack.c.l.b16 %v652
    %v692 = vunpack.c.l.b16 %v653
    %v693 = vpack.c.b16 %v678, %v677
    %v694 = vpack.c.b16 %v680, %v679
    %v695 = vpack.c.b16 %v682, %v681
    %v696 = vpack.c.b16 %v684, %v683
    %v697 = vpack.c.b16 %v686, %v685
    %v698 = vpack.c.b16 %v688, %v687
    %v699 = vpack.c.b16 %v690, %v689
    %v700 = vpack.c.b16 %v692, %v691
    %709 = vmatprep.subr.bf16.mxu0 0
    %710 = vmatpush1.bf16.msra.mxu0 %v693
    %711 = vmatprep.subr.bf16.mxu0 0
    %712 = vmatpush1.bf16.msra.mxu0 %v694
    %713 = vmatprep.subr.bf16.mxu0 0
    %714 = vmatpush1.bf16.msra.mxu0 %v695
    %715 = vmatprep.subr.bf16.mxu0 0
    %716 = vmatpush1.bf16.msra.mxu0 %v696
    %717 = vmatprep.subr.bf16.mxu0 0
    %718 = vmatpush1.bf16.msra.mxu0 %v697
    %719 = vmatprep.subr.bf16.mxu0 0
    %720 = vmatpush1.bf16.msra.mxu0 %v698
    %721 = vmatprep.subr.bf16.mxu0 0
    %722 = vmatpush1.bf16.msra.mxu0 %v699
    %723 = vmatprep.subr.bf16.mxu0 0
    %724 = vmatpush1.bf16.msra.mxu0 %v700
    %725 = vmatprep.subr.bf16.mxu0 0
    %726 = vmatpush1.bf16.msra.mxu0 0
    %727 = vmatprep.subr.bf16.mxu0 0
    %728 = vmatpush1.bf16.msra.mxu0 0
    %729 = vmatprep.subr.bf16.mxu0 0
    %730 = vmatpush1.bf16.msra.mxu0 0
    %731 = vmatprep.subr.bf16.mxu0 0
    %732 = vmatpush1.bf16.msra.mxu0 0
    %733 = vmatprep.subr.bf16.mxu0 0
    %734 = vmatpush1.bf16.msra.mxu0 0
    %735 = vmatprep.subr.bf16.mxu0 0
    %736 = vmatpush1.bf16.msra.mxu0 0
    %737 = vmatprep.subr.bf16.mxu0 0
    %738 = vmatpush1.bf16.msra.mxu0 0
    %739 = vmatprep.subr.bf16.mxu0 0
    %740 = vmatpush1.bf16.msra.mxu0 0
    %741 = vmatprep.mubr.bf16.mxu0 0
    %742 = vmatmul.mubr.bf16.gmra.mrb[0].mxu0 %v637
    %v743 = vpop.f32.mrb[0].mxu0
    %v744 = vadd.f32 %v659, %v743
    %v745 = vpop.f32.mrb[0].mxu0
    %v746 = vpop.f32.mrb[0].mxu0
    %v747 = vadd.f32 %v659, %v746
    %v748 = vpop.f32.mrb[0].mxu0
    %749 = vdwg.mxu0
    %v750 = vmax.f32 %v744, 0.0
    %v751 = vmax.f32 %v747, 0.0
    %v752 = vpack.c.bf16 %v751, %v750
    %v753 = vld [vmem:[#allocation10] sm:$0xf]
    %v754 = vld [vmem:[#allocation10 + $0x4] sm:$0xf]
    %v755 = vld [vmem:[#allocation10 + $0x8] sm:$0xf]
    %v756 = vld [vmem:[#allocation10 + $0xc] sm:$0xf]
    %v757 = vld [vmem:[#allocation10 + $0x10] sm:$0xf]
    %v758 = vld [vmem:[#allocation10 + $0x14] sm:$0xf]
    %v759 = vld [vmem:[#allocation10 + $0x18] sm:$0xf]
    %v760 = vld [vmem:[#allocation10 + $0x1c] sm:$0xf]
    %v761 = vld [vmem:[#allocation10 + $0x20] sm:$0xf]
    %v762 = vld [vmem:[#allocation10 + $0x24] sm:$0xf]
    %v763 = vld [vmem:[#allocation10 + $0x28] sm:$0xf]
    %v764 = vld [vmem:[#allocation10 + $0x2c] sm:$0xf]
    %v765 = vld [vmem:[#allocation10 + $0x30] sm:$0xf]
    %v766 = vld [vmem:[#allocation10 + $0x34] sm:$0xf]
    %v767 = vld [vmem:[#allocation10 + $0x38] sm:$0xf]
    %v768 = vld [vmem:[#allocation10 + $0x3c] sm:$0xf]
    %v769 = vld [vmem:[%s7] sm:$0x1]
    %v771 = vlaneseq
    %v772 = vshrl.u32 %v771, 7
    %v773 = vsub.s32 0, %v772
    %v774 = vrot.slane %v769, %v773
    %v792 = vunpack.c.l.b16 %v753
    %v793 = vunpack.c.l.b16 %v754
    %v794 = vunpack.c.l.b16 %v755
    %v795 = vunpack.c.l.b16 %v756
    %v796 = vunpack.c.l.b16 %v757
    %v797 = vunpack.c.l.b16 %v758
    %v798 = vunpack.c.l.b16 %v759
    %v799 = vunpack.c.l.b16 %v760
    %v800 = vunpack.c.l.b16 %v761
    %v801 = vunpack.c.l.b16 %v762
    %v802 = vunpack.c.l.b16 %v763
    %v803 = vunpack.c.l.b16 %v764
    %v804 = vunpack.c.l.b16 %v765
    %v805 = vunpack.c.l.b16 %v766
    %v806 = vunpack.c.l.b16 %v767
    %v807 = vunpack.c.l.b16 %v768
    %v808 = vpack.c.b16 %v793, %v792
    %v809 = vpack.c.b16 %v795, %v794
    %v810 = vpack.c.b16 %v797, %v796
    %v811 = vpack.c.b16 %v799, %v798
    %v812 = vpack.c.b16 %v801, %v800
    %v813 = vpack.c.b16 %v803, %v802
    %v814 = vpack.c.b16 %v805, %v804
    %v815 = vpack.c.b16 %v807, %v806
    %824 = vmatprep.subr.bf16.mxu0 0
    %825 = vmatpush1.bf16.msra.mxu0 %v808
    %826 = vmatprep.subr.bf16.mxu0 0
    %827 = vmatpush1.bf16.msra.mxu0 %v809
    %828 = vmatprep.subr.bf16.mxu0 0
    %829 = vmatpush1.bf16.msra.mxu0 %v810
    %830 = vmatprep.subr.bf16.mxu0 0
    %831 = vmatpush1.bf16.msra.mxu0 %v811
    %832 = vmatprep.subr.bf16.mxu0 0
    %833 = vmatpush1.bf16.msra.mxu0 %v812
    %834 = vmatprep.subr.bf16.mxu0 0
    %835 = vmatpush1.bf16.msra.mxu0 %v813
    %836 = vmatprep.subr.bf16.mxu0 0
    %837 = vmatpush1.bf16.msra.mxu0 %v814
    %838 = vmatprep.subr.bf16.mxu0 0
    %839 = vmatpush1.bf16.msra.mxu0 %v815
    %840 = vmatprep.subr.bf16.mxu0 0
    %841 = vmatpush1.bf16.msra.mxu0 0
    %842 = vmatprep.subr.bf16.mxu0 0
    %843 = vmatpush1.bf16.msra.mxu0 0
    %844 = vmatprep.subr.bf16.mxu0 0
    %845 = vmatpush1.bf16.msra.mxu0 0
    %846 = vmatprep.subr.bf16.mxu0 0
    %847 = vmatpush1.bf16.msra.mxu0 0
    %848 = vmatprep.subr.bf16.mxu0 0
    %849 = vmatpush1.bf16.msra.mxu0 0
    %850 = vmatprep.subr.bf16.mxu0 0
    %851 = vmatpush1.bf16.msra.mxu0 0
    %852 = vmatprep.subr.bf16.mxu0 0
    %853 = vmatpush1.bf16.msra.mxu0 0
    %854 = vmatprep.subr.bf16.mxu0 0
    %855 = vmatpush1.bf16.msra.mxu0 0
    %856 = vmatprep.mubr.bf16.mxu0 0
    %857 = vmatmul.mubr.bf16.gmra.mrb[0].mxu0 %v752
    %v858 = vpop.f32.mrb[0].mxu0
    %v859 = vadd.f32 %v774, %v858
    %v860 = vpop.f32.mrb[0].mxu0
    %v861 = vpop.f32.mrb[0].mxu0
    %v862 = vadd.f32 %v774, %v861
    %v863 = vpop.f32.mrb[0].mxu0
    %864 = vdwg.mxu0
    %s865 = sld [smem:[#allocation3]]
    %s866 = smul.u32 %s865, 4
    %s867 = sadd.s32 %s866, 4
    %v868 = vlaneseq
    %v869 = vand.u32 %v868, 127
    %v870 = vstv %s866
    %vm871 = vcmp.ge.s32.totalorder %v869, %v870
    %v872 = vstv %s867
    %vm873 = vcmp.lt.s32.totalorder %v869, %v872
    %vm874 = vmand %vm871, %vm873
    %v875 = vsel %vm874, 1, 0
    %vm876 = vcmp.eq.s32.totalorder %v875, 1
    %v877 = vsel %vm876, %v859, -1e+11
    %v878 = vsel %vm876, %v862, -1e+11
    %879 = vst [vmem:[#allocation12] sm:$0xff] %v877
    %880 = vst [vmem:[#allocation12 + $0x8] sm:$0xff] %v878
    // Predicated region
    $region46: #{tpu_custom_call.1} parent=1 // pred_check
      _
    $region47: #{tpu_custom_call.1} parent=1 // pred_check_branch
      %882 = sbr.rel (0) target = $region49
    $region48: #{tpu_custom_call.1} parent=1 // pred_region
      %s884 = ssub.s32 256, 256
      %885 = vsyncadd [#allocation6], %s884
      %s886 = sshll.u32 [#allocation12], 4
      %s887 = int_to_ptr.vmem [resolvable:$true] %s886
      %892 = dma.vmem_to_hbm [thread:$0]  %s887, 256, %s8, [#allocation6], 128, 128, 8
    $region49: #{tpu_custom_call.1} parent=1 // pred_fallthru
      _
    // Predicated region
    $region50: #{tpu_custom_call.1} parent=1 // pred_check
      _
    $region51: #{tpu_custom_call.1} parent=1 // pred_check_branch
      %894 = sbr.rel (0) target = $region53
    $region52: #{tpu_custom_call.1} parent=1 // pred_region
      %895 = dma.done [#allocation6], 256
    $region53: #{tpu_custom_call.1} parent=1 // pred_fallthru
      _
    %896 = vsyncpa [#allocation5], 1
    %897 = vsyncpa [#allocation8], 1
    %898 = vsyncpa [#allocation11], 1
    %899 = vsyncpa [#allocation6], 1

</llo_original>
